<compile_context>
chip_gen: v7x
topology: tpu7x:2x2x1
jax: 0.10.0
libtpu: 0.0.40
codegen_flags: <defaults>
</compile_context>

<pallas_src>
import numpy as np
import jax
import jax.numpy as jnp
from jax.experimental import pallas as pl
from jax.experimental.pallas import tpu as pltpu

BN_EPS = 1e-5


def _round_up(n, m):
    return ((n + m - 1) // m) * m


# ----------------------------------------------------------------------------
# Hoisted, per-model preparation (NOT on the per-frame path)
# ----------------------------------------------------------------------------
def prepare_params(params):
    """Fold eval-mode BatchNorm + bias into the conv weights / a single shift,
    flip the time taps for causal streaming, pad Cout to a sublane multiple,
    and split the weight matrix into cache-frame / current-frame blocks."""
    prepped = []
    for p in params:
        w = np.asarray(p["weight"], np.float64)            # (Cin, Cout, kT, kF)
        Cin, Cout, kT, kF = w.shape
        sT, sF = p["stride_size"]
        assert sT == 1, "streaming decoder assumes time stride 1"
        assert kT >= 2, "streaming conv-transpose cache assumes kT >= 2"
        pad = (kF - 1) // 2
        Cp = _round_up(Cout, 8)                            # sublane-aligned Cout

        scale = np.asarray(p["gamma"], np.float64) / np.sqrt(
            np.asarray(p["var"], np.float64) + BN_EPS)
        shift = (np.asarray(p["bias"], np.float64) * scale
                 + np.asarray(p["beta"], np.float64)
                 - np.asarray(p["mean"], np.float64) * scale)

        # (kT, kF, Cin, Cout): BN scale folded, time flipped so block t
        # multiplies input frame t directly (frame kT-1 == current frame).
        w_cl = np.transpose(w, (2, 3, 0, 1)) * scale[None, None, None, :]
        w_cl = w_cl[::-1]
        # Padded channel-major weight: wT[kf*Cp + co, t*Cin + ci] = w_cl[t,kf,ci,co]
        wT = np.zeros((kF, Cp, kT, Cin), np.float64)
        wT[:, :Cout, :, :] = np.transpose(w_cl, (1, 3, 0, 2))
        wT = wT.reshape(kF * Cp, kT * Cin)

        shift_p = np.zeros((Cp, 1), np.float64)
        shift_p[:Cout, 0] = shift

        prepped.append(dict(
            w_old=jnp.asarray(wT[:, :(kT - 1) * Cin], jnp.float32),   # cache taps
            w_cur=jnp.asarray(wT[:, (kT - 1) * Cin:], jnp.float32),   # current frame
            shift=jnp.asarray(shift_p, jnp.float32),
            Cin=Cin, Cout=Cout, Cp=Cp, kT=kT, kF=kF, sF=sF, pad=pad,
            alpha=float(p["alpha"]), identity=bool(p["identity"]),
        ))
    return prepped


def _scatter_matrices(Bc, F_in, F_out, kF, sF, pad):
    """Constant 0/1 maps (per batch group): S[kf, b*F_in+fi, b*F_out+fo] = 1 iff
    fo == sF*fi + kf - pad (with the implicit crop to [0, F_out)).  Applied as
    matmuls they implement the frequency upsample / shift / crop / interleave
    of the transposed conv."""
    S = np.zeros((kF, Bc * F_in, Bc * F_out), np.float32)
    for kf in range(kF):
        for fi in range(F_in):
            fo = sF * fi + kf - pad
            if 0 <= fo < F_out:
                for b in range(Bc):
                    S[kf, b * F_in + fi, b * F_out + fo] = 1.0
    return S


# ----------------------------------------------------------------------------
# Streaming-cache layout converters (init / interop only, not per-frame)
# ----------------------------------------------------------------------------
def cache_nchw_to_km(c, G):
    """(B, C, kT-1, F) NCHW cache -> kernel-resident (G, (kT-1)*C, (B//G)*F)."""
    B, C, T, F = c.shape
    Bc = B // G
    r = jnp.asarray(c).reshape(G, Bc, C, T, F)
    return jnp.transpose(r, (0, 3, 2, 1, 4)).reshape(G, T * C, Bc * F)


def cache_km_to_nchw(c, G, C, T, F):
    """Inverse of cache_nchw_to_km (testing / interop only)."""
    Bc = c.shape[-1] // F
    r = jnp.asarray(c).reshape(G, T, C, Bc, F)
    return jnp.transpose(r, (0, 3, 2, 1, 4)).reshape(G * Bc, C, T, F)


# ----------------------------------------------------------------------------
# Fused multi-layer kernel (one grid step = one batch group)
# ----------------------------------------------------------------------------
def _make_fused_kernel(metas):
    N = len(metas)

    def kernel(*refs):
        n_in = 1 + 6 * N
        y_ref = refs[n_in]
        cache_out = refs[n_in + 1:]
        x = refs[0][...]                                   # (Cx0, P0)
        for j, m in enumerate(metas):
            en_ref, cin_ref, w_old_ref, w_cur_ref, scat_ref, shift_ref = \
                refs[1 + 6 * j: 7 + 6 * j]
            Cin, Cout, Cp = m["Cin"], m["Cout"], m["Cp"]
            kT, kF = m["kT"], m["kF"]

            old = cin_ref[...]                             # ((kT-1)*Cin, P)
            # current frame == torch.cat([x, en], dim=1) == new cache frame
            cur = jnp.concatenate([x, en_ref[...]], axis=0)        # (Cin, P)

            # new streaming cache written straight from the kernel, in its
            # resident channel-major layout (aliased in place).
            if kT == 2:
                cache_out[j][...] = cur
            else:
                cache_out[j][0:(kT - 2) * Cin, :] = old[Cin:, :]
                cache_out[j][(kT - 2) * Cin:, :] = cur

            # (1) all kT*kF conv-transpose taps as two MXU dots
            #     (cache-frame block + current-frame block; no xk concatenate).
            y = (jnp.dot(w_old_ref[...], old, preferred_element_type=jnp.float32)
                 + jnp.dot(w_cur_ref[...], cur, preferred_element_type=jnp.float32))
            # y: (kF*Cp, P)

            # (2) frequency upsample / shift / crop / interleave as constant 0/1
            #     scatter matmuls; Cp-aligned slices are free static views.
            # TODO(synk): merge the kF scatter dots into one block-scatter dot.
            o = jnp.dot(y[0:Cp, :], scat_ref[0],
                        preferred_element_type=jnp.float32)        # (Cp, Q)
            for kf in range(1, kF):
                o = o + jnp.dot(y[kf * Cp:(kf + 1) * Cp, :], scat_ref[kf],
                                preferred_element_type=jnp.float32)

            o = o + shift_ref[...]                         # folded bias + BatchNorm
            if not m["identity"]:
                o = jnp.where(o >= 0.0, o, m["alpha"] * o)  # PReLU
            x = o[0:Cout, :]                               # drop channel padding

        y_ref[...] = x

    return kernel


def build_forward(prepped, B, F0, num_parallel_blocks=1):
    """Returns a jitted forward(x_nchw, en_outs_nchw, caches_km) where the
    streaming caches live in the kernel's channel-major layout between frames."""
    N = len(prepped)
    G = int(num_parallel_blocks)
    assert B % G == 0, "batch must divide evenly over grid blocks"
    Bc = B // G

    # ---- static per-layer geometry + constants (built once per model) ----
    metas, scats = [], []
    F_in = F0
    for p in prepped:
        assert p["Cin"] % 2 == 0
        F_out = (F_in - 1) * p["sF"] + p["kF"] - 2 * p["pad"]
        scats.append(jnp.asarray(
            _scatter_matrices(Bc, F_in, F_out, p["kF"], p["sF"], p["pad"])))
        metas.append(dict(Cin=p["Cin"], Cout=p["Cout"], Cp=p["Cp"],
                          kT=p["kT"], kF=p["kF"], F_in=F_in, F_out=F_out,
                          alpha=p["alpha"], identity=p["identity"]))
        F_in = F_out

    Cx0 = metas[0]["Cin"] // 2
    kernel = _make_fused_kernel(metas)

    def act_spec(C, F):                # per-batch-group activation block
        return pl.BlockSpec((None, C, Bc * F), lambda g: (g, 0, 0))

    def const_spec(shape):             # grid-invariant constants (weights etc.)
        return pl.BlockSpec(shape, lambda g: (0,) * len(shape))

    in_specs = [act_spec(Cx0, F0)]
    out_specs = [act_spec(metas[-1]["Cout"], metas[-1]["F_out"])]
    out_shape = [jax.ShapeDtypeStruct(
        (G, metas[-1]["Cout"], Bc * metas[-1]["F_out"]), jnp.float32)]
    aliases = {}
    for j, (p, m) in enumerate(zip(prepped, metas)):
        cache_rows = (m["kT"] - 1) * m["Cin"]
        in_specs += [
            act_spec(m["Cin"] // 2, m["F_in"]),            # encoder skip (en)
            act_spec(cache_rows, m["F_in"]),               # streaming cache in
            const_spec(p["w_old"].shape),
            const_spec(p["w_cur"].shape),
            const_spec(scats[j].shape),
            const_spec(p["shift"].shape),
        ]
        out_specs.append(act_spec(cache_rows, m["F_in"]))  # streaming cache out
        out_shape.append(jax.ShapeDtypeStruct(
            (G, cache_rows, Bc * m["F_in"]), jnp.float32))
        aliases[2 + 6 * j] = 1 + j     # cache input -> cache output (in place)

    call = pl.pallas_call(
        kernel,
        grid=(G,),
        in_specs=in_specs,
        out_specs=tuple(out_specs),
        out_shape=tuple(out_shape),
        input_output_aliases=aliases,
        compiler_params=pltpu.CompilerParams(
            dimension_semantics=("parallel",)),            # 2nd TC on v7x
    )

    # ---- tiny per-frame layout glue (NCHW module I/O), under the same jit ----
    def nchw_to_km(a):                 # (B, C, 1, F) -> (G, C, Bc*F)
        _, C, _, F = a.shape
        r = a[:, :, 0, :].reshape(G, Bc, C, F)
        return jnp.transpose(r, (0, 2, 1, 3)).reshape(G, C, Bc * F)

    def km_to_nchw(a, F):              # (G, C, Bc*F) -> (B, C, 1, F)
        C = a.shape[1]
        r = a.reshape(G, C, Bc, F)
        return jnp.transpose(r, (0, 2, 1, 3)).reshape(B, C, F)[:, :, None, :]

    def forward(x, en_outs, caches_km):
        args = [nchw_to_km(x)]
        for j in range(N):
            args += [nchw_to_km(en_outs[N - 1 - j]), caches_km[j],
                     prepped[j]["w_old"], prepped[j]["w_cur"], scats[j],
                     prepped[j]["shift"]]
        outs = call(*args)
        y = km_to_nchw(outs[0], metas[-1]["F_out"])
        return y, list(outs[1:])

    return jax.jit(forward)


# ----------------------------------------------------------------------------
# Parameter init + pure-numpy reference (same assumed semantics)
# ----------------------------------------------------------------------------
def init_params(key, out_channels, filter_size, kernel_size, stride_size):
    N = len(filter_size)
    params = []
    for j in range(N):
        i = N - 1 - j                     # module's __init__ loop variable
        Cin = filter_size[i] * 2
        Cout = out_channels if i == 0 else filter_size[i - 1]
        kT, kF = kernel_size[i]
        key, k1, k2, k3, k4, k5, k6 = jax.random.split(key, 7)
        params.append(dict(
            weight=0.1 * jax.random.normal(k1, (Cin, Cout, kT, kF), jnp.float32),
            bias=0.1 * jax.random.normal(k2, (Cout,), jnp.float32),
            gamma=1.0 + 0.1 * jax.random.normal(k3, (Cout,), jnp.float32),
            beta=0.1 * jax.random.normal(k4, (Cout,), jnp.float32),
            mean=0.1 * jax.random.normal(k5, (Cout,), jnp.float32),
            var=1.0 + 0.1 * jax.random.uniform(k6, (Cout,), jnp.float32),
            alpha=(1.0 if i == 0 else 0.25),
            identity=(i == 0),             # nn.Identity for layer i == 0
            kernel_size=(kT, kF),
            stride_size=tuple(stride_size[i]),
        ))
    return params


def reference_forward(x, en_outs, de_caches, params):
    x = np.asarray(x, np.float64)
    N = len(params)
    caches = [np.asarray(c, np.float64) for c in de_caches]
    for j in range(N):
        p = params[j]
        kT, kF = p["kernel_size"]
        sT, sF = p["stride_size"]
        pad = (kF - 1) // 2
        en = np.asarray(en_outs[N - 1 - j], np.float64)
        x_cat = np.concatenate([x, en], axis=1)
        inp = np.concatenate([caches[j], x_cat], axis=2)
        caches[j] = inp[:, :, inp.shape[2] - (kT - 1):, :]
        w = np.asarray(p["weight"], np.float64)
        B, Cin, T, F_in = inp.shape
        Cout = w.shape[1]
        T_out = (T - 1) * sT + kT
        F_out = (F_in - 1) * sF + kF - 2 * pad
        full = np.zeros((B, Cout, T_out, F_out))
        for ci in range(Cin):
            for ti in range(T):
                for fi in range(F_in):
                    v = inp[:, ci, ti, fi]                    # (B,)
                    for kt in range(kT):
                        to = ti * sT + kt
                        for kf in range(kF):
                            fo = fi * sF + kf - pad
                            if 0 <= fo < F_out:
                                full[:, :, to, fo] += v[:, None] * w[ci, :, kt, kf][None, :]
        out = full[:, :, kT - 1:kT, :] + np.asarray(p["bias"])[None, :, None, None]
        scale = np.asarray(p["gamma"]) / np.sqrt(np.asarray(p["var"]) + BN_EPS)
        shift = np.asarray(p["beta"]) - np.asarray(p["mean"]) * scale
        out = out * scale[None, :, None, None] + shift[None, :, None, None]
        if not p["identity"]:
            out = np.where(out >= 0, out, p["alpha"] * out)
        x = out
    return x, caches


if __name__ == "__main__":
    out_channels = 2
    filter_size = [8, 16]
    kernel_size = [(2, 3), (2, 3)]
    stride_size = [(1, 2), (1, 2)]
    N = len(filter_size)
    B, F0 = 16, 16          # 16 streams -> lane widths 128 / 248 / 488
    G = 2                   # batch groups = grid blocks (2nd TensorCore on v7x)

    key = jax.random.PRNGKey(0)
    key, kp = jax.random.split(key)
    params = init_params(kp, out_channels, filter_size, kernel_size, stride_size)

    # frequency size at the input of each decoder layer
    F_sizes = [F0]
    for j in range(N):
        i = N - 1 - j
        kF, sF = kernel_size[i][1], stride_size[i][1]
        pad = (kF - 1) // 2
        F_sizes.append((F_sizes[-1] - 1) * sF + kF - 2 * pad)

    def rand_inputs(key):
        key, kx = jax.random.split(key)
        x = jax.random.normal(kx, (B, filter_size[N - 1], 1, F0), jnp.float32)
        en_outs = []
        for i in range(N):
            j = N - 1 - i          # decoder layer that consumes en_outs[i]
            key, k = jax.random.split(key)
            en_outs.append(jax.random.normal(
                k, (B, filter_size[i], 1, F_sizes[j]), jnp.float32))
        return key, x, en_outs

    key, x1, en1 = rand_inputs(key)
    key, x2, en2 = rand_inputs(key)

    de_caches0 = []
    for j in range(N):
        i = N - 1 - j
        kT = kernel_size[i][0]
        key, k = jax.random.split(key)
        de_caches0.append(jax.random.normal(
            k, (B, filter_size[i] * 2, kT - 1, F_sizes[j]), jnp.float32))

    # hoisted (per-model) preparation + jitted per-frame forward
    prepped = prepare_params(params)
    forward = build_forward(prepped, B=B, F0=F0, num_parallel_blocks=G)

    # one-time conversion of the initial caches into the kernel-resident layout
    caches_km = [cache_nchw_to_km(c, G) for c in de_caches0]

    # two streaming frames: caches produced by the kernel are fed straight back
    y1, caches_km = forward(x1, en1, caches_km)
    y2, caches_km = forward(x2, en2, caches_km)
    y1 = jax.block_until_ready(y1)
    y2 = jax.block_until_ready(y2)
    caches_km = [jax.block_until_ready(c) for c in caches_km]

    # reference (float64 numpy), threaded over the same two frames
    y1_ref, caches_ref = reference_forward(x1, en1, de_caches0, params)
    y2_ref, caches_ref = reference_forward(x2, en2, caches_ref, params)

    assert y1.shape == y1_ref.shape, (y1.shape, y1_ref.shape)
    assert y2.shape == y2_ref.shape, (y2.shape, y2_ref.shape)
    assert np.allclose(np.asarray(y1), y1_ref, rtol=1e-4, atol=1e-4), \
        "decoder output mismatch (frame 1)"
    assert np.allclose(np.asarray(y2), y2_ref, rtol=1e-4, atol=1e-4), \
        "decoder output mismatch (frame 2)"
    for j in range(N):
        i = N - 1 - j
        kT = kernel_size[i][0]
        Cin = filter_size[i] * 2
        c_nchw = cache_km_to_nchw(caches_km[j], G, Cin, kT - 1, F_sizes[j])
        assert c_nchw.shape == caches_ref[j].shape, (c_nchw.shape, caches_ref[j].shape)
        assert np.allclose(np.asarray(c_nchw), caches_ref[j], rtol=1e-4, atol=1e-4), \
            "cache mismatch"

    print("KERNEL_OK")
</pallas_src>

<mosaic_0001>
module attributes {stable_mosaic.version = 11 : i64} {
  func.func @kernel(%arg0: i32, %arg1: memref<1x16x128xf32, #tpu.memory_space<vmem>>, %arg2: memref<1x16x128xf32, #tpu.memory_space<vmem>>, %arg3: memref<1x32x128xf32, #tpu.memory_space<vmem>>, %arg4: memref<24x32xf32, #tpu.memory_space<vmem>>, %arg5: memref<24x32xf32, #tpu.memory_space<vmem>>, %arg6: memref<3x128x248xf32, #tpu.memory_space<vmem>>, %arg7: memref<8x1xf32, #tpu.memory_space<vmem>>, %arg8: memref<1x8x248xf32, #tpu.memory_space<vmem>>, %arg9: memref<1x16x248xf32, #tpu.memory_space<vmem>>, %arg10: memref<24x16xf32, #tpu.memory_space<vmem>>, %arg11: memref<24x16xf32, #tpu.memory_space<vmem>>, %arg12: memref<3x248x488xf32, #tpu.memory_space<vmem>>, %arg13: memref<8x1xf32, #tpu.memory_space<vmem>>, %arg14: memref<1x2x488xf32, #tpu.memory_space<vmem>>, %arg15: memref<1x32x128xf32, #tpu.memory_space<vmem>>, %arg16: memref<1x16x248xf32, #tpu.memory_space<vmem>>) attributes {dimension_semantics = [#tpu.dimension_semantics<parallel>], iteration_bounds = array<i64: 2>, scalar_prefetch = 0 : i64, scratch_operands = 0 : i64, tpu.core_type = #tpu.core_type<tc>, window_params = [{transform_indices = @transform_0, window_bounds = array<i64: 1, 16, 128>}, {transform_indices = @transform_1, window_bounds = array<i64: 1, 16, 128>}, {transform_indices = @transform_2, window_bounds = array<i64: 1, 32, 128>}, {pipeline_mode = #tpu.pipeline_mode<synchronous>, transform_indices = @transform_3, window_bounds = array<i64: 24, 32>}, {pipeline_mode = #tpu.pipeline_mode<synchronous>, transform_indices = @transform_4, window_bounds = array<i64: 24, 32>}, {pipeline_mode = #tpu.pipeline_mode<synchronous>, transform_indices = @transform_5, window_bounds = array<i64: 3, 128, 248>}, {pipeline_mode = #tpu.pipeline_mode<synchronous>, transform_indices = @transform_6, window_bounds = array<i64: 8, 1>}, {transform_indices = @transform_7, window_bounds = array<i64: 1, 8, 248>}, {transform_indices = @transform_8, window_bounds = array<i64: 1, 16, 248>}, {pipeline_mode = #tpu.pipeline_mode<synchronous>, transform_indices = @transform_9, window_bounds = array<i64: 24, 16>}, {pipeline_mode = #tpu.pipeline_mode<synchronous>, transform_indices = @transform_10, window_bounds = array<i64: 24, 16>}, {pipeline_mode = #tpu.pipeline_mode<synchronous>, transform_indices = @transform_11, window_bounds = array<i64: 3, 248, 488>}, {pipeline_mode = #tpu.pipeline_mode<synchronous>, transform_indices = @transform_12, window_bounds = array<i64: 8, 1>}, {transform_indices = @transform_13, window_bounds = array<i64: 1, 2, 488>}, {transform_indices = @transform_14, window_bounds = array<i64: 1, 32, 128>}, {transform_indices = @transform_15, window_bounds = array<i64: 1, 16, 248>}]} {
    %c0 = arith.constant 0 : index
    %c0_0 = arith.constant 0 : index
    %c0_1 = arith.constant 0 : index
    %0 = vector.load %arg1[%c0, %c0_0, %c0_1] : memref<1x16x128xf32, #tpu.memory_space<vmem>>, vector<1x16x128xf32>
    %1 = vector.shape_cast %0 : vector<1x16x128xf32> to vector<16x128xf32>
    %c0_2 = arith.constant 0 : index
    %c0_3 = arith.constant 0 : index
    %c0_4 = arith.constant 0 : index
    %2 = vector.load %arg3[%c0_2, %c0_3, %c0_4] : memref<1x32x128xf32, #tpu.memory_space<vmem>>, vector<1x32x128xf32>
    %3 = vector.shape_cast %2 : vector<1x32x128xf32> to vector<32x128xf32>
    %c0_5 = arith.constant 0 : index
    %c0_6 = arith.constant 0 : index
    %c0_7 = arith.constant 0 : index
    %4 = vector.load %arg2[%c0_5, %c0_6, %c0_7] : memref<1x16x128xf32, #tpu.memory_space<vmem>>, vector<1x16x128xf32>
    %5 = vector.shape_cast %4 : vector<1x16x128xf32> to vector<16x128xf32>
    %6 = tpu.concatenate %1, %5 in 0 : vector<16x128xf32>, vector<16x128xf32> -> vector<32x128xf32>
    %c0_8 = arith.constant 0 : index
    %c0_9 = arith.constant 0 : index
    %c0_10 = arith.constant 0 : index
    %7 = vector.load %arg15[%c0_8, %c0_9, %c0_10] : memref<1x32x128xf32, #tpu.memory_space<vmem>>, vector<1x32x128xf32>
    %8 = vector.shape_cast %7 : vector<1x32x128xf32> to vector<32x128xf32>
    %9 = vector.shape_cast %6 : vector<32x128xf32> to vector<1x32x128xf32>
    tpu.vector_store %arg15[%c0_8, %c0_9, %c0_10], %9 {strides = array<i32>} : memref<1x32x128xf32, #tpu.memory_space<vmem>>, vector<1x32x128xf32>,
    %c0_11 = arith.constant 0 : index
    %c0_12 = arith.constant 0 : index
    %10 = vector.load %arg4[%c0_11, %c0_12] : memref<24x32xf32, #tpu.memory_space<vmem>>, vector<24x32xf32>
    %cst = arith.constant dense<0.000000e+00> : vector<24x128xf32>
    %11 = tpu.matmul %10, %3, %cst {dimension_numbers = #tpu.dot_dimension_numbers<[1], [0], [0], [1], [0, 0, 1, 1], [], []>} : vector<24x32xf32>, vector<32x128xf32>, vector<24x128xf32> -> vector<24x128xf32>
    %c0_13 = arith.constant 0 : index
    %c0_14 = arith.constant 0 : index
    %12 = vector.load %arg5[%c0_13, %c0_14] : memref<24x32xf32, #tpu.memory_space<vmem>>, vector<24x32xf32>
    %cst_15 = arith.constant dense<0.000000e+00> : vector<24x128xf32>
    %13 = tpu.matmul %12, %6, %cst_15 {dimension_numbers = #tpu.dot_dimension_numbers<[1], [0], [0], [1], [0, 0, 1, 1], [], []>} : vector<24x32xf32>, vector<32x128xf32>, vector<24x128xf32> -> vector<24x128xf32>
    %14 = arith.addf %11, %13 : vector<24x128xf32>
    %15 = vector.extract_strided_slice %14 {offsets = [0, 0], sizes = [8, 128], strides = [1, 1]} : vector<24x128xf32> to vector<8x128xf32>
    %c0_16 = arith.constant 0 : index
    %c0_17 = arith.constant 0 : index
    %c0_18 = arith.constant 0 : index
    %16 = vector.load %arg6[%c0_16, %c0_17, %c0_18] : memref<3x128x248xf32, #tpu.memory_space<vmem>>, vector<1x128x248xf32>
    %17 = vector.shape_cast %16 : vector<1x128x248xf32> to vector<128x248xf32>
    %cst_19 = arith.constant dense<0.000000e+00> : vector<8x248xf32>
    %18 = tpu.matmul %15, %17, %cst_19 {dimension_numbers = #tpu.dot_dimension_numbers<[1], [0], [0], [1], [0, 0, 1, 1], [], []>} : vector<8x128xf32>, vector<128x248xf32>, vector<8x248xf32> -> vector<8x248xf32>
    %19 = vector.extract_strided_slice %14 {offsets = [8, 0], sizes = [8, 128], strides = [1, 1]} : vector<24x128xf32> to vector<8x128xf32>
    %c1 = arith.constant 1 : index
    %c0_20 = arith.constant 0 : index
    %c0_21 = arith.constant 0 : index
    %20 = vector.load %arg6[%c1, %c0_20, %c0_21] : memref<3x128x248xf32, #tpu.memory_space<vmem>>, vector<1x128x248xf32>
    %21 = vector.shape_cast %20 : vector<1x128x248xf32> to vector<128x248xf32>
    %cst_22 = arith.constant dense<0.000000e+00> : vector<8x248xf32>
    %22 = tpu.matmul %19, %21, %cst_22 {dimension_numbers = #tpu.dot_dimension_numbers<[1], [0], [0], [1], [0, 0, 1, 1], [], []>} : vector<8x128xf32>, vector<128x248xf32>, vector<8x248xf32> -> vector<8x248xf32>
    %23 = arith.addf %18, %22 : vector<8x248xf32>
    %24 = vector.extract_strided_slice %14 {offsets = [16, 0], sizes = [8, 128], strides = [1, 1]} : vector<24x128xf32> to vector<8x128xf32>
    %c2 = arith.constant 2 : index
    %c0_23 = arith.constant 0 : index
    %c0_24 = arith.constant 0 : index
    %25 = vector.load %arg6[%c2, %c0_23, %c0_24] : memref<3x128x248xf32, #tpu.memory_space<vmem>>, vector<1x128x248xf32>
    %26 = vector.shape_cast %25 : vector<1x128x248xf32> to vector<128x248xf32>
    %cst_25 = arith.constant dense<0.000000e+00> : vector<8x248xf32>
    %27 = tpu.matmul %24, %26, %cst_25 {dimension_numbers = #tpu.dot_dimension_numbers<[1], [0], [0], [1], [0, 0, 1, 1], [], []>} : vector<8x128xf32>, vector<128x248xf32>, vector<8x248xf32> -> vector<8x248xf32>
    %28 = arith.addf %23, %27 : vector<8x248xf32>
    %c0_26 = arith.constant 0 : index
    %c0_27 = arith.constant 0 : index
    %29 = vector.load %arg7[%c0_26, %c0_27] : memref<8x1xf32, #tpu.memory_space<vmem>>, vector<8x1xf32>
    %30 = vector.broadcast %29 : vector<8x1xf32> to vector<8x248xf32>
    %31 = arith.addf %28, %30 : vector<8x248xf32>
    %cst_28 = arith.constant 0.000000e+00 : f32
    %32 = vector.broadcast %cst_28 : f32 to vector<8x248xf32>
    %33 = arith.cmpf oge, %31, %32 : vector<8x248xf32>
    %cst_29 = arith.constant 2.500000e-01 : f32
    %34 = vector.broadcast %cst_29 : f32 to vector<8x248xf32>
    %35 = arith.mulf %34, %31 : vector<8x248xf32>
    %36 = arith.select %33, %31, %35 : vector<8x248xi1>, vector<8x248xf32>
    %c0_30 = arith.constant 0 : index
    %c0_31 = arith.constant 0 : index
    %c0_32 = arith.constant 0 : index
    %37 = vector.load %arg9[%c0_30, %c0_31, %c0_32] : memref<1x16x248xf32, #tpu.memory_space<vmem>>, vector<1x16x248xf32>
    %38 = vector.shape_cast %37 : vector<1x16x248xf32> to vector<16x248xf32>
    %c0_33 = arith.constant 0 : index
    %c0_34 = arith.constant 0 : index
    %c0_35 = arith.constant 0 : index
    %39 = vector.load %arg8[%c0_33, %c0_34, %c0_35] : memref<1x8x248xf32, #tpu.memory_space<vmem>>, vector<1x8x248xf32>
    %40 = vector.shape_cast %39 : vector<1x8x248xf32> to vector<8x248xf32>
    %41 = tpu.concatenate %36, %40 in 0 : vector<8x248xf32>, vector<8x248xf32> -> vector<16x248xf32>
    %c0_36 = arith.constant 0 : index
    %c0_37 = arith.constant 0 : index
    %c0_38 = arith.constant 0 : index
    %42 = vector.load %arg16[%c0_36, %c0_37, %c0_38] : memref<1x16x248xf32, #tpu.memory_space<vmem>>, vector<1x16x248xf32>
    %43 = vector.shape_cast %42 : vector<1x16x248xf32> to vector<16x248xf32>
    %44 = vector.shape_cast %41 : vector<16x248xf32> to vector<1x16x248xf32>
    tpu.vector_store %arg16[%c0_36, %c0_37, %c0_38], %44 {strides = array<i32>} : memref<1x16x248xf32, #tpu.memory_space<vmem>>, vector<1x16x248xf32>,
    %c0_39 = arith.constant 0 : index
    %c0_40 = arith.constant 0 : index
    %45 = vector.load %arg10[%c0_39, %c0_40] : memref<24x16xf32, #tpu.memory_space<vmem>>, vector<24x16xf32>
    %cst_41 = arith.constant dense<0.000000e+00> : vector<24x248xf32>
    %46 = tpu.matmul %45, %38, %cst_41 {dimension_numbers = #tpu.dot_dimension_numbers<[1], [0], [0], [1], [0, 0, 1, 1], [], []>} : vector<24x16xf32>, vector<16x248xf32>, vector<24x248xf32> -> vector<24x248xf32>
    %c0_42 = arith.constant 0 : index
    %c0_43 = arith.constant 0 : index
    %47 = vector.load %arg11[%c0_42, %c0_43] : memref<24x16xf32, #tpu.memory_space<vmem>>, vector<24x16xf32>
    %cst_44 = arith.constant dense<0.000000e+00> : vector<24x248xf32>
    %48 = tpu.matmul %47, %41, %cst_44 {dimension_numbers = #tpu.dot_dimension_numbers<[1], [0], [0], [1], [0, 0, 1, 1], [], []>} : vector<24x16xf32>, vector<16x248xf32>, vector<24x248xf32> -> vector<24x248xf32>
    %49 = arith.addf %46, %48 : vector<24x248xf32>
    %50 = vector.extract_strided_slice %49 {offsets = [0, 0], sizes = [8, 248], strides = [1, 1]} : vector<24x248xf32> to vector<8x248xf32>
    %c0_45 = arith.constant 0 : index
    %c0_46 = arith.constant 0 : index
    %c0_47 = arith.constant 0 : index
    %51 = vector.load %arg12[%c0_45, %c0_46, %c0_47] : memref<3x248x488xf32, #tpu.memory_space<vmem>>, vector<1x248x488xf32>
    %52 = vector.shape_cast %51 : vector<1x248x488xf32> to vector<248x488xf32>
    %cst_48 = arith.constant dense<0.000000e+00> : vector<8x488xf32>
    %53 = tpu.matmul %50, %52, %cst_48 {dimension_numbers = #tpu.dot_dimension_numbers<[1], [0], [0], [1], [0, 0, 1, 1], [], []>} : vector<8x248xf32>, vector<248x488xf32>, vector<8x488xf32> -> vector<8x488xf32>
    %54 = vector.extract_strided_slice %49 {offsets = [8, 0], sizes = [8, 248], strides = [1, 1]} : vector<24x248xf32> to vector<8x248xf32>
    %c1_49 = arith.constant 1 : index
    %c0_50 = arith.constant 0 : index
    %c0_51 = arith.constant 0 : index
    %55 = vector.load %arg12[%c1_49, %c0_50, %c0_51] : memref<3x248x488xf32, #tpu.memory_space<vmem>>, vector<1x248x488xf32>
    %56 = vector.shape_cast %55 : vector<1x248x488xf32> to vector<248x488xf32>
    %cst_52 = arith.constant dense<0.000000e+00> : vector<8x488xf32>
    %57 = tpu.matmul %54, %56, %cst_52 {dimension_numbers = #tpu.dot_dimension_numbers<[1], [0], [0], [1], [0, 0, 1, 1], [], []>} : vector<8x248xf32>, vector<248x488xf32>, vector<8x488xf32> -> vector<8x488xf32>
    %58 = arith.addf %53, %57 : vector<8x488xf32>
    %59 = vector.extract_strided_slice %49 {offsets = [16, 0], sizes = [8, 248], strides = [1, 1]} : vector<24x248xf32> to vector<8x248xf32>
    %c2_53 = arith.constant 2 : index
    %c0_54 = arith.constant 0 : index
    %c0_55 = arith.constant 0 : index
    %60 = vector.load %arg12[%c2_53, %c0_54, %c0_55] : memref<3x248x488xf32, #tpu.memory_space<vmem>>, vector<1x248x488xf32>
    %61 = vector.shape_cast %60 : vector<1x248x488xf32> to vector<248x488xf32>
    %cst_56 = arith.constant dense<0.000000e+00> : vector<8x488xf32>
    %62 = tpu.matmul %59, %61, %cst_56 {dimension_numbers = #tpu.dot_dimension_numbers<[1], [0], [0], [1], [0, 0, 1, 1], [], []>} : vector<8x248xf32>, vector<248x488xf32>, vector<8x488xf32> -> vector<8x488xf32>
    %63 = arith.addf %58, %62 : vector<8x488xf32>
    %c0_57 = arith.constant 0 : index
    %c0_58 = arith.constant 0 : index
    %64 = vector.load %arg13[%c0_57, %c0_58] : memref<8x1xf32, #tpu.memory_space<vmem>>, vector<8x1xf32>
    %65 = vector.broadcast %64 : vector<8x1xf32> to vector<8x488xf32>
    %66 = arith.addf %63, %65 : vector<8x488xf32>
    %67 = vector.extract_strided_slice %66 {offsets = [0, 0], sizes = [2, 488], strides = [1, 1]} : vector<8x488xf32> to vector<2x488xf32>
    %c0_59 = arith.constant 0 : index
    %c0_60 = arith.constant 0 : index
    %c0_61 = arith.constant 0 : index
    %68 = vector.load %arg14[%c0_59, %c0_60, %c0_61] : memref<1x2x488xf32, #tpu.memory_space<vmem>>, vector<1x2x488xf32>
    %69 = vector.shape_cast %68 : vector<1x2x488xf32> to vector<2x488xf32>
    %70 = vector.shape_cast %67 : vector<2x488xf32> to vector<1x2x488xf32>
    tpu.vector_store %arg14[%c0_59, %c0_60, %c0_61], %70 {strides = array<i32>} : memref<1x2x488xf32, #tpu.memory_space<vmem>>, vector<1x2x488xf32>,
    return
  }
  func.func @transform_0(%arg0: i32) -> (i32, i32, i32) {
    %c0_i32 = arith.constant 0 : i32
    %c0_i32_0 = arith.constant 0 : i32
    %c0_i32_1 = arith.constant 0 : i32
    return %arg0, %c0_i32, %c0_i32_0 : i32, i32, i32
  }
  func.func @transform_1(%arg0: i32) -> (i32, i32, i32) {
    %c0_i32 = arith.constant 0 : i32
    %c0_i32_0 = arith.constant 0 : i32
    %c0_i32_1 = arith.constant 0 : i32
    return %arg0, %c0_i32, %c0_i32_0 : i32, i32, i32
  }
  func.func @transform_2(%arg0: i32) -> (i32, i32, i32) {
    %c0_i32 = arith.constant 0 : i32
    %c0_i32_0 = arith.constant 0 : i32
    %c0_i32_1 = arith.constant 0 : i32
    return %arg0, %c0_i32, %c0_i32_0 : i32, i32, i32
  }
  func.func @transform_3(%arg0: i32) -> (i32, i32) {
    %c0_i32 = arith.constant 0 : i32
    %c0_i32_0 = arith.constant 0 : i32
    %c0_i32_1 = arith.constant 0 : i32
    return %c0_i32, %c0_i32_0 : i32, i32
  }
  func.func @transform_4(%arg0: i32) -> (i32, i32) {
    %c0_i32 = arith.constant 0 : i32
    %c0_i32_0 = arith.constant 0 : i32
    %c0_i32_1 = arith.constant 0 : i32
    return %c0_i32, %c0_i32_0 : i32, i32
  }
  func.func @transform_5(%arg0: i32) -> (i32, i32, i32) {
    %c0_i32 = arith.constant 0 : i32
    %c0_i32_0 = arith.constant 0 : i32
    %c0_i32_1 = arith.constant 0 : i32
    %c0_i32_2 = arith.constant 0 : i32
    return %c0_i32, %c0_i32_0, %c0_i32_1 : i32, i32, i32
  }
  func.func @transform_6(%arg0: i32) -> (i32, i32) {
    %c0_i32 = arith.constant 0 : i32
    %c0_i32_0 = arith.constant 0 : i32
    %c0_i32_1 = arith.constant 0 : i32
    return %c0_i32, %c0_i32_0 : i32, i32
  }
  func.func @transform_7(%arg0: i32) -> (i32, i32, i32) {
    %c0_i32 = arith.constant 0 : i32
    %c0_i32_0 = arith.constant 0 : i32
    %c0_i32_1 = arith.constant 0 : i32
    return %arg0, %c0_i32, %c0_i32_0 : i32, i32, i32
  }
  func.func @transform_8(%arg0: i32) -> (i32, i32, i32) {
    %c0_i32 = arith.constant 0 : i32
    %c0_i32_0 = arith.constant 0 : i32
    %c0_i32_1 = arith.constant 0 : i32
    return %arg0, %c0_i32, %c0_i32_0 : i32, i32, i32
  }
  func.func @transform_9(%arg0: i32) -> (i32, i32) {
    %c0_i32 = arith.constant 0 : i32
    %c0_i32_0 = arith.constant 0 : i32
    %c0_i32_1 = arith.constant 0 : i32
    return %c0_i32, %c0_i32_0 : i32, i32
  }
  func.func @transform_10(%arg0: i32) -> (i32, i32) {
    %c0_i32 = arith.constant 0 : i32
    %c0_i32_0 = arith.constant 0 : i32
    %c0_i32_1 = arith.constant 0 : i32
    return %c0_i32, %c0_i32_0 : i32, i32
  }
  func.func @transform_11(%arg0: i32) -> (i32, i32, i32) {
    %c0_i32 = arith.constant 0 : i32
    %c0_i32_0 = arith.constant 0 : i32
    %c0_i32_1 = arith.constant 0 : i32
    %c0_i32_2 = arith.constant 0 : i32
    return %c0_i32, %c0_i32_0, %c0_i32_1 : i32, i32, i32
  }
  func.func @transform_12(%arg0: i32) -> (i32, i32) {
    %c0_i32 = arith.constant 0 : i32
    %c0_i32_0 = arith.constant 0 : i32
    %c0_i32_1 = arith.constant 0 : i32
    return %c0_i32, %c0_i32_0 : i32, i32
  }
  func.func @transform_13(%arg0: i32) -> (i32, i32, i32) {
    %c0_i32 = arith.constant 0 : i32
    %c0_i32_0 = arith.constant 0 : i32
    %c0_i32_1 = arith.constant 0 : i32
    return %arg0, %c0_i32, %c0_i32_0 : i32, i32, i32
  }
  func.func @transform_14(%arg0: i32) -> (i32, i32, i32) {
    %c0_i32 = arith.constant 0 : i32
    %c0_i32_0 = arith.constant 0 : i32
    %c0_i32_1 = arith.constant 0 : i32
    return %arg0, %c0_i32, %c0_i32_0 : i32, i32, i32
  }
  func.func @transform_15(%arg0: i32) -> (i32, i32, i32) {
    %c0_i32 = arith.constant 0 : i32
    %c0_i32_0 = arith.constant 0 : i32
    %c0_i32_1 = arith.constant 0 : i32
    return %arg0, %c0_i32, %c0_i32_0 : i32, i32, i32
  }
}

</mosaic_0001>

<llo_original>
// kernel: forward.1
$region0: #{forward.1}
  #allocation0 [shape = 'u32[]', space=smem, size = 0x4, offset = 0x4, fixed_abs, tag = 'smem constant byte address 0x4 - core index']
  #allocation1 [shape = 'u32[144,128]{1,0:T(1,128)}', space=vmem, size = 0x12000, scoped, tag = 'internal scratch']
  %s0 = inlined_call_operand.vmem [shape: f32[2,16,128], index: 0, kind: input, shape index: {}]
  %s1 = inlined_call_operand.vmem [shape: f32[2,16,128], index: 1, kind: input, shape index: {}]
  %s2 = inlined_call_operand.vmem [shape: f32[2,32,128], index: 2, kind: input, shape index: {}, may-alias: {2,14}]
  %s3 = inlined_call_operand.hbm [shape: f32[24,32], index: 3, kind: input, shape index: {}]
  %s4 = inlined_call_operand.hbm [shape: f32[24,32], index: 4, kind: input, shape index: {}]
  %s5 = inlined_call_operand.hbm [shape: f32[3,128,248], index: 5, kind: input, shape index: {}]
  %s6 = inlined_call_operand.hbm [shape: f32[8,1], index: 6, kind: input, shape index: {}]
  %s7 = inlined_call_operand.vmem [shape: f32[2,8,248], index: 7, kind: input, shape index: {}]
  %s8 = inlined_call_operand.vmem [shape: f32[2,16,248], index: 8, kind: input, shape index: {}, may-alias: {8,15}]
  %s9 = inlined_call_operand.hbm [shape: f32[24,16], index: 9, kind: input, shape index: {}]
  %s10 = inlined_call_operand.hbm [shape: f32[24,16], index: 10, kind: input, shape index: {}]
  %s11 = inlined_call_operand.hbm [shape: f32[3,248,488], index: 11, kind: input, shape index: {}]
  %s12 = inlined_call_operand.hbm [shape: f32[8,1], index: 12, kind: input, shape index: {}]
  %s13 = inlined_call_operand.vmem [shape: f32[2,2,488], index: 13, kind: output, shape index: {0}]
  %s14 = inlined_call_operand.vmem [shape: f32[2,32,128], index: 14, kind: output, shape index: {1}, may-alias: {2,14}]
  %s15 = inlined_call_operand.vmem [shape: f32[2,16,248], index: 15, kind: output, shape index: {2}, may-alias: {8,15}]
  %16 = xla_tuple %s13, %s14, %s15
  %s17 = sld [smem:[#allocation0]]
  $region133: #{forward.1} parent=0
    _
  %s19 = ssub.s32 1, %s17
  %s20 = scalar_select 0, %s19, %s17
  $region1: #{forward.1} parent=0
    #allocation2 [shape = 'u8[12288]{0}', space=vmem, size = 0x3000, scoped, tag = 'input window, operand 3, single buffered']
    #allocation3 [shape = 's32[2]{0}', space=sflag, size = 0x8, scoped, tag = 'scoped memory for forward.1']
    #allocation4 [shape = 'u8[12288]{0}', space=vmem, size = 0x3000, scoped, tag = 'input window, operand 4, single buffered']
    #allocation5 [shape = 's32[1]{0}', space=sflag, size = 0x4, scoped, tag = 'scoped memory for forward.1']
    #allocation6 [shape = 'u8[393216]{0}', space=vmem, size = 0x60000, scoped, tag = 'input window, operand 5, single buffered']
    #allocation7 [shape = 'u8[4096]{0}', space=vmem, size = 0x1000, scoped, tag = 'input window, operand 6, single buffered']
    #allocation8 [shape = 's32[1]{0}', space=sflag, size = 0x4, scoped, tag = 'scoped memory for forward.1']
    #allocation9 [shape = 'u8[12288]{0}', space=vmem, size = 0x3000, scoped, tag = 'input window, operand 9, single buffered']
    #allocation10 [shape = 'u8[12288]{0}', space=vmem, size = 0x3000, scoped, tag = 'input window, operand 10, single buffered']
    #allocation11 [shape = 's32[1]{0}', space=sflag, size = 0x4, scoped, tag = 'scoped memory for forward.1']
    #allocation12 [shape = 'u8[1523712]{0}', space=vmem, size = 0x174000, scoped, tag = 'input window, operand 11, single buffered']
    #allocation13 [shape = 'u8[4096]{0}', space=vmem, size = 0x1000, scoped, tag = 'input window, operand 12, single buffered']
    #allocation14 [shape = 's32[1]{0}', space=sflag, size = 0x4, scoped, tag = 'scoped memory for forward.1']
    %21 = vsyncpa [#allocation3], 0
    %22 = vsyncpa [#allocation5], 0
    %23 = vsyncpa [#allocation8], 0
    %24 = vsyncpa [#allocation11], 0
    %25 = vsyncpa [#allocation14], 0
    loop: start=0, step=1, limit=4
    $region2: #{forward.1} parent=1 // loop_pre_header
      _
    $region3: #{forward.1} parent=1 // loop_header
      %s27 = sphi 0, %s31
      %p28 = scmp.ge.s32.totalorder %s27, 4
      %s37 = sphi 0, %s39
      %s40 = sphi 0, %s37
      %s41 = sphi 0, %s40
      %s57 = sphi 0, %s41
      %s63 = sphi 0, %s65
      %s66 = sphi 0, %s63
      %s67 = sphi 0, %s66
      %s83 = sphi 0, %s67
      %s89 = sphi 0, %s91
      %s92 = sphi 0, %s89
      %s93 = sphi 0, %s92
      %s109 = sphi 0, %s93
      %s113 = sphi 0, %s113
      %s115 = sphi 0, %s113
      %s116 = sphi 0, %s115
      %s130 = sphi 0, %s116
      %s134 = sphi 0, %s134
      %s136 = sphi 0, %s134
      %s137 = sphi 0, %s136
      %s151 = sphi 0, %s137
      %s155 = sphi 0, %s155
      %s157 = sphi 0, %s155
      %s158 = sphi 0, %s157
      %s172 = sphi 0, %s158
      %s176 = sphi 0, %s176
      %s178 = sphi 0, %s176
      %s179 = sphi 0, %s178
      %s193 = sphi 0, %s179
      %s199 = sphi 0, %s201
      %s202 = sphi 0, %s199
      %s203 = sphi 0, %s202
      %s219 = sphi 0, %s203
      %s225 = sphi 0, %s227
      %s228 = sphi 0, %s225
      %s229 = sphi 0, %s228
      %s245 = sphi 0, %s229
      %s249 = sphi 0, %s249
      %s251 = sphi 0, %s249
      %s252 = sphi 0, %s251
      %s266 = sphi 0, %s252
      %s270 = sphi 0, %s270
      %s272 = sphi 0, %s270
      %s273 = sphi 0, %s272
      %s287 = sphi 0, %s273
      %s291 = sphi 0, %s291
      %s293 = sphi 0, %s291
      %s294 = sphi 0, %s293
      %s308 = sphi 0, %s294
      %s312 = sphi 0, %s312
      %s314 = sphi 0, %s312
      %s315 = sphi 0, %s314
      %s329 = sphi 0, %s315
      %s335 = sphi 0, %s337
      %s338 = sphi 0, %s335
      %s339 = sphi 0, %s338
      %s355 = sphi 0, %s339
      %s361 = sphi 0, %s363
      %s364 = sphi 0, %s361
      %s365 = sphi 0, %s364
      %s381 = sphi 0, %s365
      %s387 = sphi 0, %s389
      %s390 = sphi 0, %s387
      %s391 = sphi 0, %s390
      %s407 = sphi 0, %s391
    $region4: #{forward.1} parent=1 // loop_header_branch
      %30 = sbr.rel (%p28) target = $region8
    $region5: #{forward.1} parent=1 // loop_body
      %s32 = ssub.s32 %s27, 1
      %s33 = ssub.s32 %s27, 2
      %s34 = sadd.s32 %s27, 1
      %s35 = ssub.s32 %s27, %s34
      %p36 = scmp.eq.s32.totalorder %s35, 0
      %s38 = sadd.s32 %s37, 1
      %s39 = scalar_select %p36, %s37, %s38
      %p42 = pneg %p36
      %p43 = scmp.eq.s32.totalorder %s27, 1
      %p44 = por %p42, %p43
      %p45 = scmp.ne.s32.totalorder %s37, %s40
      %p46 = scmp.eq.s32.totalorder %s27, 0
      %p47 = por %p45, %p46
      %p48 = scmp.ne.s32.totalorder %s37, %s40
      %p49 = scmp.eq.s32.totalorder %s32, 1
      %p50 = por %p48, %p49
      %p51 = scmp.ne.s32.totalorder %s40, %s41
      %p52 = scmp.eq.s32.totalorder %s32, 0
      %p53 = por %p51, %p52
      %p54 = scmp.ne.s32.totalorder %s40, %s41
      %p55 = scmp.eq.s32.totalorder %s33, 1
      %p56 = por %p54, %p55
      %p58 = scmp.ne.s32.totalorder %s41, %s57
      %p59 = scmp.eq.s32.totalorder %s33, 0
      %p60 = por %p58, %p59
      %s61 = ssub.s32 %s27, %s34
      %p62 = scmp.eq.s32.totalorder %s61, 0
      %s64 = sadd.s32 %s63, 1
      %s65 = scalar_select %p62, %s63, %s64
      %p68 = pneg %p62
      %p69 = scmp.eq.s32.totalorder %s27, 1
      %p70 = por %p68, %p69
      %p71 = scmp.ne.s32.totalorder %s63, %s66
      %p72 = scmp.eq.s32.totalorder %s27, 0
      %p73 = por %p71, %p72
      %p74 = scmp.ne.s32.totalorder %s63, %s66
      %p75 = scmp.eq.s32.totalorder %s32, 1
      %p76 = por %p74, %p75
      %p77 = scmp.ne.s32.totalorder %s66, %s67
      %p78 = scmp.eq.s32.totalorder %s32, 0
      %p79 = por %p77, %p78
      %p80 = scmp.ne.s32.totalorder %s66, %s67
      %p81 = scmp.eq.s32.totalorder %s33, 1
      %p82 = por %p80, %p81
      %p84 = scmp.ne.s32.totalorder %s67, %s83
      %p85 = scmp.eq.s32.totalorder %s33, 0
      %p86 = por %p84, %p85
      %s87 = ssub.s32 %s27, %s34
      %p88 = scmp.eq.s32.totalorder %s87, 0
      %s90 = sadd.s32 %s89, 1
      %s91 = scalar_select %p88, %s89, %s90
      %p94 = pneg %p88
      %p95 = scmp.eq.s32.totalorder %s27, 1
      %p96 = por %p94, %p95
      %p97 = scmp.ne.s32.totalorder %s89, %s92
      %p98 = scmp.eq.s32.totalorder %s27, 0
      %p99 = por %p97, %p98
      %p100 = scmp.ne.s32.totalorder %s89, %s92
      %p101 = scmp.eq.s32.totalorder %s32, 1
      %p102 = por %p100, %p101
      %p103 = scmp.ne.s32.totalorder %s92, %s93
      %p104 = scmp.eq.s32.totalorder %s32, 0
      %p105 = por %p103, %p104
      %p106 = scmp.ne.s32.totalorder %s92, %s93
      %p107 = scmp.eq.s32.totalorder %s33, 1
      %p108 = por %p106, %p107
      %p110 = scmp.ne.s32.totalorder %s93, %s109
      %p111 = scmp.eq.s32.totalorder %s33, 0
      %p112 = por %p110, %p111
      %s114 = sadd.s32 %s113, 1
      %p117 = scmp.eq.s32.totalorder %s27, 1
      %p118 = scmp.ne.s32.totalorder %s113, %s115
      %p119 = scmp.eq.s32.totalorder %s27, 0
      %p120 = por %p118, %p119
      %p121 = scmp.ne.s32.totalorder %s113, %s115
      %p122 = scmp.eq.s32.totalorder %s32, 1
      %p123 = por %p121, %p122
      %p124 = scmp.ne.s32.totalorder %s115, %s116
      %p125 = scmp.eq.s32.totalorder %s32, 0
      %p126 = por %p124, %p125
      %p127 = scmp.ne.s32.totalorder %s115, %s116
      %p128 = scmp.eq.s32.totalorder %s33, 1
      %p129 = por %p127, %p128
      %p131 = scmp.ne.s32.totalorder %s116, %s130
      %p132 = scmp.eq.s32.totalorder %s33, 0
      %p133 = por %p131, %p132
      %s135 = sadd.s32 %s134, 1
      %p138 = scmp.eq.s32.totalorder %s27, 1
      %p139 = scmp.ne.s32.totalorder %s134, %s136
      %p140 = scmp.eq.s32.totalorder %s27, 0
      %p141 = por %p139, %p140
      %p142 = scmp.ne.s32.totalorder %s134, %s136
      %p143 = scmp.eq.s32.totalorder %s32, 1
      %p144 = por %p142, %p143
      %p145 = scmp.ne.s32.totalorder %s136, %s137
      %p146 = scmp.eq.s32.totalorder %s32, 0
      %p147 = por %p145, %p146
      %p148 = scmp.ne.s32.totalorder %s136, %s137
      %p149 = scmp.eq.s32.totalorder %s33, 1
      %p150 = por %p148, %p149
      %p152 = scmp.ne.s32.totalorder %s137, %s151
      %p153 = scmp.eq.s32.totalorder %s33, 0
      %p154 = por %p152, %p153
      %s156 = sadd.s32 %s155, 1
      %p159 = scmp.eq.s32.totalorder %s27, 1
      %p160 = scmp.ne.s32.totalorder %s155, %s157
      %p161 = scmp.eq.s32.totalorder %s27, 0
      %p162 = por %p160, %p161
      %p163 = scmp.ne.s32.totalorder %s155, %s157
      %p164 = scmp.eq.s32.totalorder %s32, 1
      %p165 = por %p163, %p164
      %p166 = scmp.ne.s32.totalorder %s157, %s158
      %p167 = scmp.eq.s32.totalorder %s32, 0
      %p168 = por %p166, %p167
      %p169 = scmp.ne.s32.totalorder %s157, %s158
      %p170 = scmp.eq.s32.totalorder %s33, 1
      %p171 = por %p169, %p170
      %p173 = scmp.ne.s32.totalorder %s158, %s172
      %p174 = scmp.eq.s32.totalorder %s33, 0
      %p175 = por %p173, %p174
      %s177 = sadd.s32 %s176, 1
      %p180 = scmp.eq.s32.totalorder %s27, 1
      %p181 = scmp.ne.s32.totalorder %s176, %s178
      %p182 = scmp.eq.s32.totalorder %s27, 0
      %p183 = por %p181, %p182
      %p184 = scmp.ne.s32.totalorder %s176, %s178
      %p185 = scmp.eq.s32.totalorder %s32, 1
      %p186 = por %p184, %p185
      %p187 = scmp.ne.s32.totalorder %s178, %s179
      %p188 = scmp.eq.s32.totalorder %s32, 0
      %p189 = por %p187, %p188
      %p190 = scmp.ne.s32.totalorder %s178, %s179
      %p191 = scmp.eq.s32.totalorder %s33, 1
      %p192 = por %p190, %p191
      %p194 = scmp.ne.s32.totalorder %s179, %s193
      %p195 = scmp.eq.s32.totalorder %s33, 0
      %p196 = por %p194, %p195
      %s197 = ssub.s32 %s27, %s34
      %p198 = scmp.eq.s32.totalorder %s197, 0
      %s200 = sadd.s32 %s199, 1
      %s201 = scalar_select %p198, %s199, %s200
      %p204 = pneg %p198
      %p205 = scmp.eq.s32.totalorder %s27, 1
      %p206 = por %p204, %p205
      %p207 = scmp.ne.s32.totalorder %s199, %s202
      %p208 = scmp.eq.s32.totalorder %s27, 0
      %p209 = por %p207, %p208
      %p210 = scmp.ne.s32.totalorder %s199, %s202
      %p211 = scmp.eq.s32.totalorder %s32, 1
      %p212 = por %p210, %p211
      %p213 = scmp.ne.s32.totalorder %s202, %s203
      %p214 = scmp.eq.s32.totalorder %s32, 0
      %p215 = por %p213, %p214
      %p216 = scmp.ne.s32.totalorder %s202, %s203
      %p217 = scmp.eq.s32.totalorder %s33, 1
      %p218 = por %p216, %p217
      %p220 = scmp.ne.s32.totalorder %s203, %s219
      %p221 = scmp.eq.s32.totalorder %s33, 0
      %p222 = por %p220, %p221
      %s223 = ssub.s32 %s27, %s34
      %p224 = scmp.eq.s32.totalorder %s223, 0
      %s226 = sadd.s32 %s225, 1
      %s227 = scalar_select %p224, %s225, %s226
      %p230 = pneg %p224
      %p231 = scmp.eq.s32.totalorder %s27, 1
      %p232 = por %p230, %p231
      %p233 = scmp.ne.s32.totalorder %s225, %s228
      %p234 = scmp.eq.s32.totalorder %s27, 0
      %p235 = por %p233, %p234
      %p236 = scmp.ne.s32.totalorder %s225, %s228
      %p237 = scmp.eq.s32.totalorder %s32, 1
      %p238 = por %p236, %p237
      %p239 = scmp.ne.s32.totalorder %s228, %s229
      %p240 = scmp.eq.s32.totalorder %s32, 0
      %p241 = por %p239, %p240
      %p242 = scmp.ne.s32.totalorder %s228, %s229
      %p243 = scmp.eq.s32.totalorder %s33, 1
      %p244 = por %p242, %p243
      %p246 = scmp.ne.s32.totalorder %s229, %s245
      %p247 = scmp.eq.s32.totalorder %s33, 0
      %p248 = por %p246, %p247
      %s250 = sadd.s32 %s249, 1
      %p253 = scmp.eq.s32.totalorder %s27, 1
      %p254 = scmp.ne.s32.totalorder %s249, %s251
      %p255 = scmp.eq.s32.totalorder %s27, 0
      %p256 = por %p254, %p255
      %p257 = scmp.ne.s32.totalorder %s249, %s251
      %p258 = scmp.eq.s32.totalorder %s32, 1
      %p259 = por %p257, %p258
      %p260 = scmp.ne.s32.totalorder %s251, %s252
      %p261 = scmp.eq.s32.totalorder %s32, 0
      %p262 = por %p260, %p261
      %p263 = scmp.ne.s32.totalorder %s251, %s252
      %p264 = scmp.eq.s32.totalorder %s33, 1
      %p265 = por %p263, %p264
      %p267 = scmp.ne.s32.totalorder %s252, %s266
      %p268 = scmp.eq.s32.totalorder %s33, 0
      %p269 = por %p267, %p268
      %s271 = sadd.s32 %s270, 1
      %p274 = scmp.eq.s32.totalorder %s27, 1
      %p275 = scmp.ne.s32.totalorder %s270, %s272
      %p276 = scmp.eq.s32.totalorder %s27, 0
      %p277 = por %p275, %p276
      %p278 = scmp.ne.s32.totalorder %s270, %s272
      %p279 = scmp.eq.s32.totalorder %s32, 1
      %p280 = por %p278, %p279
      %p281 = scmp.ne.s32.totalorder %s272, %s273
      %p282 = scmp.eq.s32.totalorder %s32, 0
      %p283 = por %p281, %p282
      %p284 = scmp.ne.s32.totalorder %s272, %s273
      %p285 = scmp.eq.s32.totalorder %s33, 1
      %p286 = por %p284, %p285
      %p288 = scmp.ne.s32.totalorder %s273, %s287
      %p289 = scmp.eq.s32.totalorder %s33, 0
      %p290 = por %p288, %p289
      %s292 = sadd.s32 %s291, 1
      %p295 = scmp.eq.s32.totalorder %s27, 1
      %p296 = scmp.ne.s32.totalorder %s291, %s293
      %p297 = scmp.eq.s32.totalorder %s27, 0
      %p298 = por %p296, %p297
      %p299 = scmp.ne.s32.totalorder %s291, %s293
      %p300 = scmp.eq.s32.totalorder %s32, 1
      %p301 = por %p299, %p300
      %p302 = scmp.ne.s32.totalorder %s293, %s294
      %p303 = scmp.eq.s32.totalorder %s32, 0
      %p304 = por %p302, %p303
      %p305 = scmp.ne.s32.totalorder %s293, %s294
      %p306 = scmp.eq.s32.totalorder %s33, 1
      %p307 = por %p305, %p306
      %p309 = scmp.ne.s32.totalorder %s294, %s308
      %p310 = scmp.eq.s32.totalorder %s33, 0
      %p311 = por %p309, %p310
      %s313 = sadd.s32 %s312, 1
      %p316 = scmp.eq.s32.totalorder %s27, 1
      %p317 = scmp.ne.s32.totalorder %s312, %s314
      %p318 = scmp.eq.s32.totalorder %s27, 0
      %p319 = por %p317, %p318
      %p320 = scmp.ne.s32.totalorder %s312, %s314
      %p321 = scmp.eq.s32.totalorder %s32, 1
      %p322 = por %p320, %p321
      %p323 = scmp.ne.s32.totalorder %s314, %s315
      %p324 = scmp.eq.s32.totalorder %s32, 0
      %p325 = por %p323, %p324
      %p326 = scmp.ne.s32.totalorder %s314, %s315
      %p327 = scmp.eq.s32.totalorder %s33, 1
      %p328 = por %p326, %p327
      %p330 = scmp.ne.s32.totalorder %s315, %s329
      %p331 = scmp.eq.s32.totalorder %s33, 0
      %p332 = por %p330, %p331
      %s333 = ssub.s32 %s27, %s34
      %p334 = scmp.eq.s32.totalorder %s333, 0
      %s336 = sadd.s32 %s335, 1
      %s337 = scalar_select %p334, %s335, %s336
      %p340 = pneg %p334
      %p341 = scmp.eq.s32.totalorder %s27, 1
      %p342 = por %p340, %p341
      %p343 = scmp.ne.s32.totalorder %s335, %s338
      %p344 = scmp.eq.s32.totalorder %s27, 0
      %p345 = por %p343, %p344
      %p346 = scmp.ne.s32.totalorder %s335, %s338
      %p347 = scmp.eq.s32.totalorder %s32, 1
      %p348 = por %p346, %p347
      %p349 = scmp.ne.s32.totalorder %s338, %s339
      %p350 = scmp.eq.s32.totalorder %s32, 0
      %p351 = por %p349, %p350
      %p352 = scmp.ne.s32.totalorder %s338, %s339
      %p353 = scmp.eq.s32.totalorder %s33, 1
      %p354 = por %p352, %p353
      %p356 = scmp.ne.s32.totalorder %s339, %s355
      %p357 = scmp.eq.s32.totalorder %s33, 0
      %p358 = por %p356, %p357
      %s359 = ssub.s32 %s27, %s34
      %p360 = scmp.eq.s32.totalorder %s359, 0
      %s362 = sadd.s32 %s361, 1
      %s363 = scalar_select %p360, %s361, %s362
      %p366 = pneg %p360
      %p367 = scmp.eq.s32.totalorder %s27, 1
      %p368 = por %p366, %p367
      %p369 = scmp.ne.s32.totalorder %s361, %s364
      %p370 = scmp.eq.s32.totalorder %s27, 0
      %p371 = por %p369, %p370
      %p372 = scmp.ne.s32.totalorder %s361, %s364
      %p373 = scmp.eq.s32.totalorder %s32, 1
      %p374 = por %p372, %p373
      %p375 = scmp.ne.s32.totalorder %s364, %s365
      %p376 = scmp.eq.s32.totalorder %s32, 0
      %p377 = por %p375, %p376
      %p378 = scmp.ne.s32.totalorder %s364, %s365
      %p379 = scmp.eq.s32.totalorder %s33, 1
      %p380 = por %p378, %p379
      %p382 = scmp.ne.s32.totalorder %s365, %s381
      %p383 = scmp.eq.s32.totalorder %s33, 0
      %p384 = por %p382, %p383
      %s385 = ssub.s32 %s27, %s34
      %p386 = scmp.eq.s32.totalorder %s385, 0
      %s388 = sadd.s32 %s387, 1
      %s389 = scalar_select %p386, %s387, %s388
      %p392 = pneg %p386
      %p393 = scmp.eq.s32.totalorder %s27, 1
      %p394 = por %p392, %p393
      %p395 = scmp.ne.s32.totalorder %s387, %s390
      %p396 = scmp.eq.s32.totalorder %s27, 0
      %p397 = por %p395, %p396
      %p398 = scmp.ne.s32.totalorder %s387, %s390
      %p399 = scmp.eq.s32.totalorder %s32, 1
      %p400 = por %p398, %p399
      %p401 = scmp.ne.s32.totalorder %s390, %s391
      %p402 = scmp.eq.s32.totalorder %s32, 0
      %p403 = por %p401, %p402
      %p404 = scmp.ne.s32.totalorder %s390, %s391
      %p405 = scmp.eq.s32.totalorder %s33, 1
      %p406 = por %p404, %p405
      %p408 = scmp.ne.s32.totalorder %s391, %s407
      %p409 = scmp.eq.s32.totalorder %s33, 0
      %p410 = por %p408, %p409
      %p411 = scmp.le.s32.totalorder 1, %s27
      %p412 = scmp.lt.s32.totalorder %s27, 3
      %p413 = pnand %p411, %p412
      %p414 = pneg %p413
      // Predicated region
      $region9: #{forward.1} parent=5 // pred_check
        _
      $region10: #{forward.1} parent=5 // pred_check_branch
        %416 = sbr.rel (%p413) target = $region12
      $region11: #{forward.1} parent=5 // pred_region
        %s417 = ssub.s32 %s27, 1
        // Predicated region
        $region13: #{forward.1} parent=11 // pred_check
          %p418 = pneg %p126
        $region14: #{forward.1} parent=11 // pred_check_branch
          %420 = sbr.rel (%p418) target = $region16
        $region15: #{forward.1} parent=11 // pred_region
          %s422 = ssub.s32 384, 384
          %423 = vsyncadd [#allocation3], %s422
          %s424 = sshll.u32 [#allocation2], 4
          %s425 = int_to_ptr.vmem [resolvable:$true] %s424
          %430 = dma.hbm_to_vmem [thread:$0]  %s3, 384, %s425, [#allocation3], 128, 128, 8
        $region16: #{forward.1} parent=11 // pred_fallthru
          _
        // Predicated region
        $region17: #{forward.1} parent=11 // pred_check
          %p431 = pneg %p147
        $region18: #{forward.1} parent=11 // pred_check_branch
          %433 = sbr.rel (%p431) target = $region20
        $region19: #{forward.1} parent=11 // pred_region
          %s435 = ssub.s32 384, 384
          %436 = vsyncadd [#allocation5], %s435
          %s437 = sshll.u32 [#allocation4], 4
          %s438 = int_to_ptr.vmem [resolvable:$true] %s437
          %443 = dma.hbm_to_vmem [thread:$0]  %s4, 384, %s438, [#allocation5], 128, 128, 8
        $region20: #{forward.1} parent=11 // pred_fallthru
          _
        // Predicated region
        $region21: #{forward.1} parent=11 // pred_check
          %p444 = pneg %p168
        $region22: #{forward.1} parent=11 // pred_check_branch
          %446 = sbr.rel (%p444) target = $region24
        $region23: #{forward.1} parent=11 // pred_region
          %s448 = ssub.s32 12288, 12288
          %449 = vsyncadd [#allocation5], %s448
          %s450 = sshll.u32 [#allocation6], 4
          %s451 = int_to_ptr.vmem [resolvable:$true] %s450
          %456 = dma.hbm_to_vmem [thread:$0]  %s5, 12288, %s451, [#allocation5], 256, 256, 16
        $region24: #{forward.1} parent=11 // pred_fallthru
          _
        // Predicated region
        $region25: #{forward.1} parent=11 // pred_check
          %p457 = pneg %p189
        $region26: #{forward.1} parent=11 // pred_check_branch
          %459 = sbr.rel (%p457) target = $region28
        $region27: #{forward.1} parent=11 // pred_region
          %s461 = ssub.s32 128, 128
          %462 = vsyncadd [#allocation8], %s461
          %s464 = sshll.u32 [#allocation7], 4
          %s465 = int_to_ptr.vmem [resolvable:$true] %s464
          %467 = dma.hbm_to_vmem [thread:$0]  %s6, 128, %s465, [#allocation8]
        $region28: #{forward.1} parent=11 // pred_fallthru
          _
        // Predicated region
        $region29: #{forward.1} parent=11 // pred_check
          %p468 = pneg %p262
        $region30: #{forward.1} parent=11 // pred_check_branch
          %470 = sbr.rel (%p468) target = $region32
        $region31: #{forward.1} parent=11 // pred_region
          %s472 = ssub.s32 384, 384
          %473 = vsyncadd [#allocation8], %s472
          %s474 = sshll.u32 [#allocation9], 4
          %s475 = int_to_ptr.vmem [resolvable:$true] %s474
          %480 = dma.hbm_to_vmem [thread:$0]  %s9, 384, %s475, [#allocation8], 128, 128, 8
        $region32: #{forward.1} parent=11 // pred_fallthru
          _
        // Predicated region
        $region33: #{forward.1} parent=11 // pred_check
          %p481 = pneg %p283
        $region34: #{forward.1} parent=11 // pred_check_branch
          %483 = sbr.rel (%p481) target = $region36
        $region35: #{forward.1} parent=11 // pred_region
          %s485 = ssub.s32 384, 384
          %486 = vsyncadd [#allocation11], %s485
          %s487 = sshll.u32 [#allocation10], 4
          %s488 = int_to_ptr.vmem [resolvable:$true] %s487
          %493 = dma.hbm_to_vmem [thread:$0]  %s10, 384, %s488, [#allocation11], 128, 128, 8
        $region36: #{forward.1} parent=11 // pred_fallthru
          _
        // Predicated region
        $region37: #{forward.1} parent=11 // pred_check
          %p494 = pneg %p304
        $region38: #{forward.1} parent=11 // pred_check_branch
          %496 = sbr.rel (%p494) target = $region40
        $region39: #{forward.1} parent=11 // pred_region
          %s498 = ssub.s32 47616, 47616
          %499 = vsyncadd [#allocation11], %s498
          %s500 = sshll.u32 [#allocation12], 4
          %s501 = int_to_ptr.vmem [resolvable:$true] %s500
          %506 = dma.hbm_to_vmem [thread:$0]  %s11, 47616, %s501, [#allocation11], 512, 512, 32
        $region40: #{forward.1} parent=11 // pred_fallthru
          _
        // Predicated region
        $region41: #{forward.1} parent=11 // pred_check
          %p507 = pneg %p325
        $region42: #{forward.1} parent=11 // pred_check_branch
          %509 = sbr.rel (%p507) target = $region44
        $region43: #{forward.1} parent=11 // pred_region
          %s511 = ssub.s32 128, 128
          %512 = vsyncadd [#allocation14], %s511
          %s514 = sshll.u32 [#allocation13], 4
          %s515 = int_to_ptr.vmem [resolvable:$true] %s514
          %517 = dma.hbm_to_vmem [thread:$0]  %s12, 128, %s515, [#allocation14]
        $region44: #{forward.1} parent=11 // pred_fallthru
          _
      $region12: #{forward.1} parent=5 // pred_fallthru
        _
      %p518 = scmp.lt.s32.totalorder %s27, 2
      // Predicated region
      $region45: #{forward.1} parent=5 // pred_check
        %p519 = pneg %p518
      $region46: #{forward.1} parent=5 // pred_check_branch
        %521 = sbr.rel (%p519) target = $region48
      $region47: #{forward.1} parent=5 // pred_region
        // Predicated region
        $region49: #{forward.1} parent=47 // pred_check
          %p522 = pneg %p47
        $region50: #{forward.1} parent=47 // pred_check_branch
          %524 = sbr.rel (%p522) target = $region52
        $region51: #{forward.1} parent=47 // pred_region
          %p525 = scmp.lt.s32.totalorder %s27, 1
          %s526 = scalar_select %p525, %s27, 1
          %s527 = smul.addr %s526, 2
          %s528 = smul.addr %s527, 8
          %s529 = scalar_lea.vmem %s0, %s528
        $region52: #{forward.1} parent=47 // pred_fallthru
          _
        // Predicated region
        $region53: #{forward.1} parent=47 // pred_check
          %p530 = pneg %p73
        $region54: #{forward.1} parent=47 // pred_check_branch
          %532 = sbr.rel (%p530) target = $region56
        $region55: #{forward.1} parent=47 // pred_region
          %p533 = scmp.lt.s32.totalorder %s27, 1
          %s534 = scalar_select %p533, %s27, 1
          %s535 = smul.addr %s534, 2
          %s536 = smul.addr %s535, 8
          %s537 = scalar_lea.vmem %s1, %s536
        $region56: #{forward.1} parent=47 // pred_fallthru
          _
        // Predicated region
        $region57: #{forward.1} parent=47 // pred_check
          %p538 = pneg %p99
        $region58: #{forward.1} parent=47 // pred_check_branch
          %540 = sbr.rel (%p538) target = $region60
        $region59: #{forward.1} parent=47 // pred_region
          %p541 = scmp.lt.s32.totalorder %s27, 1
          %s542 = scalar_select %p541, %s27, 1
          %s543 = smul.addr %s542, 4
          %s544 = smul.addr %s543, 8
          %s545 = scalar_lea.vmem %s2, %s544
        $region60: #{forward.1} parent=47 // pred_fallthru
          _
        // Predicated region
        $region61: #{forward.1} parent=47 // pred_check
          %p546 = pneg %p209
        $region62: #{forward.1} parent=47 // pred_check_branch
          %548 = sbr.rel (%p546) target = $region64
        $region63: #{forward.1} parent=47 // pred_region
          %p549 = scmp.lt.s32.totalorder %s27, 1
          %s550 = scalar_select %p549, %s27, 1
          %s551 = smul.addr %s550, 2
          %s552 = smul.addr %s551, 8
          %s553 = scalar_lea.vmem %s7, %s552
        $region64: #{forward.1} parent=47 // pred_fallthru
          _
        // Predicated region
        $region65: #{forward.1} parent=47 // pred_check
          %p554 = pneg %p235
        $region66: #{forward.1} parent=47 // pred_check_branch
          %556 = sbr.rel (%p554) target = $region68
        $region67: #{forward.1} parent=47 // pred_region
          %p557 = scmp.lt.s32.totalorder %s27, 1
          %s558 = scalar_select %p557, %s27, 1
          %s559 = smul.addr %s558, 4
          %s560 = smul.addr %s559, 8
          %s561 = scalar_lea.vmem %s8, %s560
        $region68: #{forward.1} parent=47 // pred_fallthru
          _
      $region48: #{forward.1} parent=5 // pred_fallthru
        _
      %p562 = scmp.le.s32.totalorder 1, %s27
      %p563 = scmp.lt.s32.totalorder %s27, 3
      %p564 = pnand %p562, %p563
      %p565 = pneg %p564
      // Predicated region
      $region69: #{forward.1} parent=5 // pred_check
        _
      $region70: #{forward.1} parent=5 // pred_check_branch
        %567 = sbr.rel (%p564) target = $region72
      $region71: #{forward.1} parent=5 // pred_region
        %s568 = ssub.s32 %s27, 1
        // Predicated region
        $region73: #{forward.1} parent=71 // pred_check
          %p569 = pneg %p126
        $region74: #{forward.1} parent=71 // pred_check_branch
          %571 = sbr.rel (%p569) target = $region76
        $region75: #{forward.1} parent=71 // pred_region
          %572 = dma.done [#allocation3], 384
        $region76: #{forward.1} parent=71 // pred_fallthru
          _
        // Predicated region
        $region77: #{forward.1} parent=71 // pred_check
          %p573 = pneg %p147
        $region78: #{forward.1} parent=71 // pred_check_branch
          %575 = sbr.rel (%p573) target = $region80
        $region79: #{forward.1} parent=71 // pred_region
          %576 = dma.done [#allocation5], 384
        $region80: #{forward.1} parent=71 // pred_fallthru
          _
        // Predicated region
        $region81: #{forward.1} parent=71 // pred_check
          %p577 = pneg %p168
        $region82: #{forward.1} parent=71 // pred_check_branch
          %579 = sbr.rel (%p577) target = $region84
        $region83: #{forward.1} parent=71 // pred_region
          %580 = dma.done [#allocation5], 12288
        $region84: #{forward.1} parent=71 // pred_fallthru
          _
        // Predicated region
        $region85: #{forward.1} parent=71 // pred_check
          %p581 = pneg %p189
        $region86: #{forward.1} parent=71 // pred_check_branch
          %583 = sbr.rel (%p581) target = $region88
        $region87: #{forward.1} parent=71 // pred_region
          %584 = dma.done [#allocation8], 128
        $region88: #{forward.1} parent=71 // pred_fallthru
          _
        // Predicated region
        $region89: #{forward.1} parent=71 // pred_check
          %p585 = pneg %p262
        $region90: #{forward.1} parent=71 // pred_check_branch
          %587 = sbr.rel (%p585) target = $region92
        $region91: #{forward.1} parent=71 // pred_region
          %588 = dma.done [#allocation8], 384
        $region92: #{forward.1} parent=71 // pred_fallthru
          _
        // Predicated region
        $region93: #{forward.1} parent=71 // pred_check
          %p589 = pneg %p283
        $region94: #{forward.1} parent=71 // pred_check_branch
          %591 = sbr.rel (%p589) target = $region96
        $region95: #{forward.1} parent=71 // pred_region
          %592 = dma.done [#allocation11], 384
        $region96: #{forward.1} parent=71 // pred_fallthru
          _
        // Predicated region
        $region97: #{forward.1} parent=71 // pred_check
          %p593 = pneg %p304
        $region98: #{forward.1} parent=71 // pred_check_branch
          %595 = sbr.rel (%p593) target = $region100
        $region99: #{forward.1} parent=71 // pred_region
          %596 = dma.done [#allocation11], 47616
        $region100: #{forward.1} parent=71 // pred_fallthru
          _
        // Predicated region
        $region101: #{forward.1} parent=71 // pred_check
          %p597 = pneg %p325
        $region102: #{forward.1} parent=71 // pred_check_branch
          %599 = sbr.rel (%p597) target = $region104
        $region103: #{forward.1} parent=71 // pred_region
          %600 = dma.done [#allocation14], 128
        $region104: #{forward.1} parent=71 // pred_fallthru
          _
        %p601 = scmp.lt.s32.totalorder %s32, 1
        %s602 = scalar_select %p601, %s32, 1
        %s603 = smul.addr %s602, 2
        %s604 = smul.addr %s603, 8
        %s605 = scalar_lea.vmem %s0, %s604
        %p606 = pneg %p53
        %p607 = pneg %p50
        %p608 = scmp.lt.s32.totalorder %s32, 1
        %s609 = scalar_select %p608, %s32, 1
        %s610 = smul.addr %s609, 2
        %s611 = smul.addr %s610, 8
        %s612 = scalar_lea.vmem %s1, %s611
        %p613 = pneg %p79
        %p614 = pneg %p76
        %p615 = scmp.lt.s32.totalorder %s32, 1
        %s616 = scalar_select %p615, %s32, 1
        %s617 = smul.addr %s616, 4
        %s618 = smul.addr %s617, 8
        %s619 = scalar_lea.vmem %s2, %s618
        %p620 = pneg %p105
        %p621 = pneg %p102
        %p622 = pneg %p126
        %p623 = pneg %p123
        %p624 = pneg %p147
        %p625 = pneg %p144
        %p626 = pneg %p168
        %p627 = pneg %p165
        %p628 = pneg %p189
        %p629 = pneg %p186
        %p630 = scmp.lt.s32.totalorder %s32, 1
        %s631 = scalar_select %p630, %s32, 1
        %s632 = smul.addr %s631, 2
        %s633 = smul.addr %s632, 8
        %s634 = scalar_lea.vmem %s7, %s633
        %p635 = pneg %p215
        %p636 = pneg %p212
        %p637 = scmp.lt.s32.totalorder %s32, 1
        %s638 = scalar_select %p637, %s32, 1
        %s639 = smul.addr %s638, 4
        %s640 = smul.addr %s639, 8
        %s641 = scalar_lea.vmem %s8, %s640
        %p642 = pneg %p241
        %p643 = pneg %p238
        %p644 = pneg %p262
        %p645 = pneg %p259
        %p646 = pneg %p283
        %p647 = pneg %p280
        %p648 = pneg %p304
        %p649 = pneg %p301
        %p650 = pneg %p325
        %p651 = pneg %p322
        %p652 = pneg %p351
        %p653 = pneg %p348
        %p654 = scmp.lt.s32.totalorder %s32, 1
        %s655 = scalar_select %p654, %s32, 1
        %s656 = smul.addr %s655, 4
        %s657 = smul.addr %s656, 2
        %s658 = scalar_lea.vmem %s13, %s657
        %p659 = pneg %p377
        %p660 = pneg %p374
        %p661 = scmp.lt.s32.totalorder %s32, 1
        %s662 = scalar_select %p661, %s32, 1
        %s663 = smul.addr %s662, 4
        %s664 = smul.addr %s663, 8
        %s665 = scalar_lea.vmem %s14, %s664
        %p666 = pneg %p403
        %p667 = pneg %p400
        %p668 = scmp.lt.s32.totalorder %s32, 1
        %s669 = scalar_select %p668, %s32, 1
        %s670 = smul.addr %s669, 4
        %s671 = smul.addr %s670, 8
        %s672 = scalar_lea.vmem %s15, %s671
        %p673 = scmp.lt.s32.totalorder %s32, 1
        %s674 = scalar_select %p673, %s32, 1
        %s675 = smul.addr %s674, 2
        %s676 = smul.addr %s675, 8
        %s677 = scalar_lea.vmem %s0, %s676
        %p678 = scmp.lt.s32.totalorder %s32, 1
        %s679 = scalar_select %p678, %s32, 1
        %s680 = smul.addr %s679, 2
        %s681 = smul.addr %s680, 8
        %s682 = scalar_lea.vmem %s1, %s681
        %p683 = scmp.lt.s32.totalorder %s32, 1
        %s684 = scalar_select %p683, %s32, 1
        %s685 = smul.addr %s684, 4
        %s686 = smul.addr %s685, 8
        %s687 = scalar_lea.vmem %s2, %s686
        %p688 = scmp.lt.s32.totalorder %s32, 1
        %s689 = scalar_select %p688, %s32, 1
        %s690 = smul.addr %s689, 2
        %s691 = smul.addr %s690, 8
        %s692 = scalar_lea.vmem %s7, %s691
        %p693 = scmp.lt.s32.totalorder %s32, 1
        %s694 = scalar_select %p693, %s32, 1
        %s695 = smul.addr %s694, 4
        %s696 = smul.addr %s695, 8
        %s697 = scalar_lea.vmem %s8, %s696
        %p698 = scmp.lt.s32.totalorder %s32, 1
        %s699 = scalar_select %p698, %s32, 1
        %s700 = smul.addr %s699, 4
        %s701 = smul.addr %s700, 2
        %s702 = scalar_lea.vmem %s13, %s701
        %p703 = scmp.lt.s32.totalorder %s32, 1
        %s704 = scalar_select %p703, %s32, 1
        %s705 = smul.addr %s704, 4
        %s706 = smul.addr %s705, 8
        %s707 = scalar_lea.vmem %s14, %s706
        %p708 = scmp.lt.s32.totalorder %s32, 1
        %s709 = scalar_select %p708, %s32, 1
        %s710 = smul.addr %s709, 4
        %s711 = smul.addr %s710, 8
        %s712 = scalar_lea.vmem %s15, %s711
        %v713 = vld [vmem:[%s677] sm:$0xff]
        %v714 = vld [vmem:[%s677 + $0x8] sm:$0xff]
        %v715 = vld [vmem:[%s687] sm:$0xff]
        %v716 = vld [vmem:[%s687 + $0x8] sm:$0xff]
        %v717 = vld [vmem:[%s687 + $0x10] sm:$0xff]
        %v718 = vld [vmem:[%s687 + $0x18] sm:$0xff]
        %v719 = vld [vmem:[%s682] sm:$0xff]
        %v720 = vld [vmem:[%s682 + $0x8] sm:$0xff]
        %721 = vst [vmem:[%s707] sm:$0xff] %v713
        %722 = vst [vmem:[%s707 + $0x8] sm:$0xff] %v714
        %723 = vst [vmem:[%s707 + $0x10] sm:$0xff] %v719
        %724 = vst [vmem:[%s707 + $0x18] sm:$0xff] %v720
        %v725 = vld [vmem:[#allocation2] sm:$0xff]
        %v726 = vld [vmem:[#allocation2 + $0x8] sm:$0xff]
        %v727 = vld [vmem:[#allocation2 + $0x10] sm:$0xff]
        %v728 = vld [vmem:[#allocation4] sm:$0xff]
        %v729 = vld [vmem:[#allocation4 + $0x8] sm:$0xff]
        %v730 = vld [vmem:[#allocation4 + $0x10] sm:$0xff]
        %vm731 = vcmask 261120
        %v733 = vsel %vm731, %v728, 0
        %v736 = vsel %vm731, %v729, 0
        %v739 = vsel %vm731, %v730, 0
        %741 = vmatprep.subr.mxu0 0.0
        %742 = vmatpush1.msra.mxu0 %v713
        %743 = vmatprep.subr.mxu0 0.0
        %744 = vmatpush1.msra.mxu0 %v714
        %745 = vmatprep.subr.mxu0 0.0
        %746 = vmatpush1.msra.mxu0 %v719
        %747 = vmatprep.subr.mxu0 0.0
        %748 = vmatpush1.msra.mxu0 %v720
        %749 = vmatprep.subr.mxu0 0.0
        %750 = vmatpush1.msra.mxu0 0.0
        %751 = vmatprep.subr.mxu0 0.0
        %752 = vmatpush1.msra.mxu0 0.0
        %753 = vmatprep.subr.mxu0 0.0
        %754 = vmatpush1.msra.mxu0 0.0
        %755 = vmatprep.subr.mxu0 0.0
        %756 = vmatpush1.msra.mxu0 0.0
        %757 = vmatprep.subr.mxu0 0.0
        %758 = vmatpush1.msra.mxu0 0.0
        %759 = vmatprep.subr.mxu0 0.0
        %760 = vmatpush1.msra.mxu0 0.0
        %761 = vmatprep.subr.mxu0 0.0
        %762 = vmatpush1.msra.mxu0 0.0
        %763 = vmatprep.subr.mxu0 0.0
        %764 = vmatpush1.msra.mxu0 0.0
        %765 = vmatprep.subr.mxu0 0.0
        %766 = vmatpush1.msra.mxu0 0.0
        %767 = vmatprep.subr.mxu0 0.0
        %768 = vmatpush1.msra.mxu0 0.0
        %769 = vmatprep.subr.mxu0 0.0
        %770 = vmatpush1.msra.mxu0 0.0
        %771 = vmatprep.subr.mxu0 0.0
        %772 = vmatpush1.msra.mxu0 0.0
        %773 = vmatprep.subr.mxu0 0.0
        %774 = vmatpush1.msra.mxu0 0.0
        %775 = vmatprep.subr.mxu0 0.0
        %776 = vmatpush1.msra.mxu0 0.0
        %777 = vmatprep.subr.mxu0 0.0
        %778 = vmatpush1.msra.mxu0 0.0
        %779 = vmatprep.subr.mxu0 0.0
        %780 = vmatpush1.msra.mxu0 0.0
        %781 = vmatprep.subr.mxu0 0.0
        %782 = vmatpush1.msra.mxu0 0.0
        %783 = vmatprep.subr.mxu0 0.0
        %784 = vmatpush1.msra.mxu0 0.0
        %785 = vmatprep.subr.mxu0 0.0
        %786 = vmatpush1.msra.mxu0 0.0
        %787 = vmatprep.subr.mxu0 0.0
        %788 = vmatpush1.msra.mxu0 0.0
        %789 = vmatprep.subr.mxu0 0.0
        %790 = vmatpush1.msra.mxu0 0.0
        %791 = vmatprep.subr.mxu0 0.0
        %792 = vmatpush1.msra.mxu0 0.0
        %793 = vmatprep.subr.mxu0 0.0
        %794 = vmatpush1.msra.mxu0 0.0
        %795 = vmatprep.subr.mxu0 0.0
        %796 = vmatpush1.msra.mxu0 0.0
        %797 = vmatprep.subr.mxu0 0.0
        %798 = vmatpush1.msra.mxu0 0.0
        %799 = vmatprep.subr.mxu0 0.0
        %800 = vmatpush1.msra.mxu0 0.0
        %801 = vmatprep.subr.mxu0 0.0
        %802 = vmatpush1.msra.mxu0 0.0
        %803 = vmatprep.subr.mxu0 0.0
        %804 = vmatpush1.msra.mxu0 0.0
        %805 = vmatprep.mubr.f32.mxu0 0.0
        %806 = vmatmul.mubr.f32.gmra.mrb[0].mxu0 %v733
        %v807 = vpop.f32.mrb[0].mxu0
        %v808 = vadd.f32 0.0, %v807
        %v809 = vpop.f32.mrb[0].mxu0
        %810 = vmatprep.mubr.f32.mxu0 0.0
        %811 = vmatmul.mubr.f32.gmra.mrb[0].mxu0 %v736
        %v812 = vpop.f32.mrb[0].mxu0
        %v813 = vadd.f32 0.0, %v812
        %v814 = vpop.f32.mrb[0].mxu0
        %815 = vmatprep.mubr.f32.mxu0 0.0
        %816 = vmatmul.mubr.f32.gmra.mrb[0].mxu0 %v739
        %v817 = vpop.f32.mrb[0].mxu0
        %v818 = vadd.f32 0.0, %v817
        %v819 = vpop.f32.mrb[0].mxu0
        %820 = vdwg.mxu0
        %v822 = vsel %vm731, %v725, 0
        %v825 = vsel %vm731, %v726, 0
        %v828 = vsel %vm731, %v727, 0
        %830 = vmatprep.subr.mxu0 0.0
        %831 = vmatpush1.msra.mxu0 %v715
        %832 = vmatprep.subr.mxu0 0.0
        %833 = vmatpush1.msra.mxu0 %v716
        %834 = vmatprep.subr.mxu0 0.0
        %835 = vmatpush1.msra.mxu0 %v717
        %836 = vmatprep.subr.mxu0 0.0
        %837 = vmatpush1.msra.mxu0 %v718
        %838 = vmatprep.subr.mxu0 0.0
        %839 = vmatpush1.msra.mxu0 0.0
        %840 = vmatprep.subr.mxu0 0.0
        %841 = vmatpush1.msra.mxu0 0.0
        %842 = vmatprep.subr.mxu0 0.0
        %843 = vmatpush1.msra.mxu0 0.0
        %844 = vmatprep.subr.mxu0 0.0
        %845 = vmatpush1.msra.mxu0 0.0
        %846 = vmatprep.subr.mxu0 0.0
        %847 = vmatpush1.msra.mxu0 0.0
        %848 = vmatprep.subr.mxu0 0.0
        %849 = vmatpush1.msra.mxu0 0.0
        %850 = vmatprep.subr.mxu0 0.0
        %851 = vmatpush1.msra.mxu0 0.0
        %852 = vmatprep.subr.mxu0 0.0
        %853 = vmatpush1.msra.mxu0 0.0
        %854 = vmatprep.subr.mxu0 0.0
        %855 = vmatpush1.msra.mxu0 0.0
        %856 = vmatprep.subr.mxu0 0.0
        %857 = vmatpush1.msra.mxu0 0.0
        %858 = vmatprep.subr.mxu0 0.0
        %859 = vmatpush1.msra.mxu0 0.0
        %860 = vmatprep.subr.mxu0 0.0
        %861 = vmatpush1.msra.mxu0 0.0
        %862 = vmatprep.subr.mxu0 0.0
        %863 = vmatpush1.msra.mxu0 0.0
        %864 = vmatprep.subr.mxu0 0.0
        %865 = vmatpush1.msra.mxu0 0.0
        %866 = vmatprep.subr.mxu0 0.0
        %867 = vmatpush1.msra.mxu0 0.0
        %868 = vmatprep.subr.mxu0 0.0
        %869 = vmatpush1.msra.mxu0 0.0
        %870 = vmatprep.subr.mxu0 0.0
        %871 = vmatpush1.msra.mxu0 0.0
        %872 = vmatprep.subr.mxu0 0.0
        %873 = vmatpush1.msra.mxu0 0.0
        %874 = vmatprep.subr.mxu0 0.0
        %875 = vmatpush1.msra.mxu0 0.0
        %876 = vmatprep.subr.mxu0 0.0
        %877 = vmatpush1.msra.mxu0 0.0
        %878 = vmatprep.subr.mxu0 0.0
        %879 = vmatpush1.msra.mxu0 0.0
        %880 = vmatprep.subr.mxu0 0.0
        %881 = vmatpush1.msra.mxu0 0.0
        %882 = vmatprep.subr.mxu0 0.0
        %883 = vmatpush1.msra.mxu0 0.0
        %884 = vmatprep.subr.mxu0 0.0
        %885 = vmatpush1.msra.mxu0 0.0
        %886 = vmatprep.subr.mxu0 0.0
        %887 = vmatpush1.msra.mxu0 0.0
        %888 = vmatprep.subr.mxu0 0.0
        %889 = vmatpush1.msra.mxu0 0.0
        %890 = vmatprep.subr.mxu0 0.0
        %891 = vmatpush1.msra.mxu0 0.0
        %892 = vmatprep.subr.mxu0 0.0
        %893 = vmatpush1.msra.mxu0 0.0
        %894 = vmatprep.mubr.f32.mxu0 0.0
        %895 = vmatmul.mubr.f32.gmra.mrb[0].mxu0 %v822
        %v896 = vpop.f32.mrb[0].mxu0
        %v897 = vadd.f32 %v808, %v896
        %v898 = vpop.f32.mrb[0].mxu0
        %899 = vmatprep.mubr.f32.mxu0 0.0
        %900 = vmatmul.mubr.f32.gmra.mrb[0].mxu0 %v825
        %v901 = vpop.f32.mrb[0].mxu0
        %v902 = vadd.f32 %v813, %v901
        %v903 = vpop.f32.mrb[0].mxu0
        %904 = vmatprep.mubr.f32.mxu0 0.0
        %905 = vmatmul.mubr.f32.gmra.mrb[0].mxu0 %v828
        %v906 = vpop.f32.mrb[0].mxu0
        %v907 = vadd.f32 %v818, %v906
        %v908 = vpop.f32.mrb[0].mxu0
        %909 = vdwg.mxu0
        %v910 = vld [vmem:[#allocation6] sm:$0xff]
        %v911 = vld [vmem:[#allocation6 + $0x8] sm:$0xff]
        %v912 = vld [vmem:[#allocation6 + $0x10] sm:$0xff]
        %v913 = vld [vmem:[#allocation6 + $0x18] sm:$0xff]
        %v914 = vld [vmem:[#allocation6 + $0x20] sm:$0xff]
        %v915 = vld [vmem:[#allocation6 + $0x28] sm:$0xff]
        %v916 = vld [vmem:[#allocation6 + $0x30] sm:$0xff]
        %v917 = vld [vmem:[#allocation6 + $0x38] sm:$0xff]
        %v918 = vld [vmem:[#allocation6 + $0x40] sm:$0xff]
        %v919 = vld [vmem:[#allocation6 + $0x48] sm:$0xff]
        %v920 = vld [vmem:[#allocation6 + $0x50] sm:$0xff]
        %v921 = vld [vmem:[#allocation6 + $0x58] sm:$0xff]
        %v922 = vld [vmem:[#allocation6 + $0x60] sm:$0xff]
        %v923 = vld [vmem:[#allocation6 + $0x68] sm:$0xff]
        %v924 = vld [vmem:[#allocation6 + $0x70] sm:$0xff]
        %v925 = vld [vmem:[#allocation6 + $0x78] sm:$0xff]
        %v926 = vld [vmem:[#allocation6 + $0x80] sm:$0xff]
        %v927 = vld [vmem:[#allocation6 + $0x88] sm:$0xff]
        %v928 = vld [vmem:[#allocation6 + $0x90] sm:$0xff]
        %v929 = vld [vmem:[#allocation6 + $0x98] sm:$0xff]
        %v930 = vld [vmem:[#allocation6 + $0xa0] sm:$0xff]
        %v931 = vld [vmem:[#allocation6 + $0xa8] sm:$0xff]
        %v932 = vld [vmem:[#allocation6 + $0xb0] sm:$0xff]
        %v933 = vld [vmem:[#allocation6 + $0xb8] sm:$0xff]
        %v934 = vld [vmem:[#allocation6 + $0xc0] sm:$0xff]
        %v935 = vld [vmem:[#allocation6 + $0xc8] sm:$0xff]
        %v936 = vld [vmem:[#allocation6 + $0xd0] sm:$0xff]
        %v937 = vld [vmem:[#allocation6 + $0xd8] sm:$0xff]
        %v938 = vld [vmem:[#allocation6 + $0xe0] sm:$0xff]
        %v939 = vld [vmem:[#allocation6 + $0xe8] sm:$0xff]
        %v940 = vld [vmem:[#allocation6 + $0xf0] sm:$0xff]
        %v941 = vld [vmem:[#allocation6 + $0xf8] sm:$0xff]
        %s942 = scalar_lea.vmem [#allocation6], 256
        %v943 = vld [vmem:[%s942] sm:$0xff]
        %v944 = vld [vmem:[%s942 + $0x8] sm:$0xff]
        %v945 = vld [vmem:[%s942 + $0x10] sm:$0xff]
        %v946 = vld [vmem:[%s942 + $0x18] sm:$0xff]
        %v947 = vld [vmem:[%s942 + $0x20] sm:$0xff]
        %v948 = vld [vmem:[%s942 + $0x28] sm:$0xff]
        %v949 = vld [vmem:[%s942 + $0x30] sm:$0xff]
        %v950 = vld [vmem:[%s942 + $0x38] sm:$0xff]
        %v951 = vld [vmem:[%s942 + $0x40] sm:$0xff]
        %v952 = vld [vmem:[%s942 + $0x48] sm:$0xff]
        %v953 = vld [vmem:[%s942 + $0x50] sm:$0xff]
        %v954 = vld [vmem:[%s942 + $0x58] sm:$0xff]
        %v955 = vld [vmem:[%s942 + $0x60] sm:$0xff]
        %v956 = vld [vmem:[%s942 + $0x68] sm:$0xff]
        %v957 = vld [vmem:[%s942 + $0x70] sm:$0xff]
        %v958 = vld [vmem:[%s942 + $0x78] sm:$0xff]
        %v959 = vld [vmem:[%s942 + $0x80] sm:$0xff]
        %v960 = vld [vmem:[%s942 + $0x88] sm:$0xff]
        %v961 = vld [vmem:[%s942 + $0x90] sm:$0xff]
        %v962 = vld [vmem:[%s942 + $0x98] sm:$0xff]
        %v963 = vld [vmem:[%s942 + $0xa0] sm:$0xff]
        %v964 = vld [vmem:[%s942 + $0xa8] sm:$0xff]
        %v965 = vld [vmem:[%s942 + $0xb0] sm:$0xff]
        %v966 = vld [vmem:[%s942 + $0xb8] sm:$0xff]
        %v967 = vld [vmem:[%s942 + $0xc0] sm:$0xff]
        %v968 = vld [vmem:[%s942 + $0xc8] sm:$0xff]
        %v969 = vld [vmem:[%s942 + $0xd0] sm:$0xff]
        %v970 = vld [vmem:[%s942 + $0xd8] sm:$0xff]
        %v971 = vld [vmem:[%s942 + $0xe0] sm:$0xff]
        %v972 = vld [vmem:[%s942 + $0xe8] sm:$0xff]
        %v973 = vld [vmem:[%s942 + $0xf0] sm:$0xff]
        %v974 = vld [vmem:[%s942 + $0xf8] sm:$0xff]
        %975 = vmatprep.subr.mxu0 %v944
        %976 = vmatpush1.msra.mxu0 %v943
        %977 = vmatprep.subr.mxu0 %v946
        %978 = vmatpush1.msra.mxu0 %v945
        %979 = vmatprep.subr.mxu0 %v948
        %980 = vmatpush1.msra.mxu0 %v947
        %981 = vmatprep.subr.mxu0 %v950
        %982 = vmatpush1.msra.mxu0 %v949
        %983 = vmatprep.subr.mxu0 %v952
        %984 = vmatpush1.msra.mxu0 %v951
        %985 = vmatprep.subr.mxu0 %v954
        %986 = vmatpush1.msra.mxu0 %v953
        %987 = vmatprep.subr.mxu0 %v956
        %988 = vmatpush1.msra.mxu0 %v955
        %989 = vmatprep.subr.mxu0 %v958
        %990 = vmatpush1.msra.mxu0 %v957
        %991 = vmatprep.subr.mxu0 %v960
        %992 = vmatpush1.msra.mxu0 %v959
        %993 = vmatprep.subr.mxu0 %v962
        %994 = vmatpush1.msra.mxu0 %v961
        %995 = vmatprep.subr.mxu0 %v964
        %996 = vmatpush1.msra.mxu0 %v963
        %997 = vmatprep.subr.mxu0 %v966
        %998 = vmatpush1.msra.mxu0 %v965
        %999 = vmatprep.subr.mxu0 %v968
        %1000 = vmatpush1.msra.mxu0 %v967
        %1001 = vmatprep.subr.mxu0 %v970
        %1002 = vmatpush1.msra.mxu0 %v969
        %1003 = vmatprep.subr.mxu0 %v972
        %1004 = vmatpush1.msra.mxu0 %v971
        %1005 = vmatprep.subr.mxu0 %v974
        %1006 = vmatpush1.msra.mxu0 %v973
        %1007 = vmatprep.subr.mxu0 0.0
        %1008 = vmatpush1.msra.mxu0 0.0
        %1009 = vmatprep.subr.mxu0 0.0
        %1010 = vmatpush1.msra.mxu0 0.0
        %1011 = vmatprep.subr.mxu0 0.0
        %1012 = vmatpush1.msra.mxu0 0.0
        %1013 = vmatprep.subr.mxu0 0.0
        %1014 = vmatpush1.msra.mxu0 0.0
        %1015 = vmatprep.subr.mxu0 0.0
        %1016 = vmatpush1.msra.mxu0 0.0
        %1017 = vmatprep.subr.mxu0 0.0
        %1018 = vmatpush1.msra.mxu0 0.0
        %1019 = vmatprep.subr.mxu0 0.0
        %1020 = vmatpush1.msra.mxu0 0.0
        %1021 = vmatprep.subr.mxu0 0.0
        %1022 = vmatpush1.msra.mxu0 0.0
        %1023 = vmatprep.subr.mxu0 0.0
        %1024 = vmatpush1.msra.mxu0 0.0
        %1025 = vmatprep.subr.mxu0 0.0
        %1026 = vmatpush1.msra.mxu0 0.0
        %1027 = vmatprep.subr.mxu0 0.0
        %1028 = vmatpush1.msra.mxu0 0.0
        %1029 = vmatprep.subr.mxu0 0.0
        %1030 = vmatpush1.msra.mxu0 0.0
        %1031 = vmatprep.subr.mxu0 0.0
        %1032 = vmatpush1.msra.mxu0 0.0
        %1033 = vmatprep.subr.mxu0 0.0
        %1034 = vmatpush1.msra.mxu0 0.0
        %1035 = vmatprep.subr.mxu0 0.0
        %1036 = vmatpush1.msra.mxu0 0.0
        %1037 = vmatprep.subr.mxu0 0.0
        %1038 = vmatpush1.msra.mxu0 0.0
        %1039 = vmatprep.mubr.f32.mxu0 0.0
        %1040 = vmatmul.mubr.f32.gmra.mrb[0].mxu0 %v902
        %v1041 = vpop.f32.mrb[0].mxu0
        %v1042 = vadd.f32 0.0, %v1041
        %v1043 = vpop.f32.mrb[0].mxu0
        %v1044 = vadd.f32 0.0, %v1043
        %1045 = vdwg.mxu0
        %1046 = vmatprep.subr.mxu0 %v911
        %1047 = vmatpush1.msra.mxu0 %v910
        %1048 = vmatprep.subr.mxu0 %v913
        %1049 = vmatpush1.msra.mxu0 %v912
        %1050 = vmatprep.subr.mxu0 %v915
        %1051 = vmatpush1.msra.mxu0 %v914
        %1052 = vmatprep.subr.mxu0 %v917
        %1053 = vmatpush1.msra.mxu0 %v916
        %1054 = vmatprep.subr.mxu0 %v919
        %1055 = vmatpush1.msra.mxu0 %v918
        %1056 = vmatprep.subr.mxu0 %v921
        %1057 = vmatpush1.msra.mxu0 %v920
        %1058 = vmatprep.subr.mxu0 %v923
        %1059 = vmatpush1.msra.mxu0 %v922
        %1060 = vmatprep.subr.mxu0 %v925
        %1061 = vmatpush1.msra.mxu0 %v924
        %1062 = vmatprep.subr.mxu0 %v927
        %1063 = vmatpush1.msra.mxu0 %v926
        %1064 = vmatprep.subr.mxu0 %v929
        %1065 = vmatpush1.msra.mxu0 %v928
        %1066 = vmatprep.subr.mxu0 %v931
        %1067 = vmatpush1.msra.mxu0 %v930
        %1068 = vmatprep.subr.mxu0 %v933
        %1069 = vmatpush1.msra.mxu0 %v932
        %1070 = vmatprep.subr.mxu0 %v935
        %1071 = vmatpush1.msra.mxu0 %v934
        %1072 = vmatprep.subr.mxu0 %v937
        %1073 = vmatpush1.msra.mxu0 %v936
        %1074 = vmatprep.subr.mxu0 %v939
        %1075 = vmatpush1.msra.mxu0 %v938
        %1076 = vmatprep.subr.mxu0 %v941
        %1077 = vmatpush1.msra.mxu0 %v940
        %1078 = vmatprep.subr.mxu0 0.0
        %1079 = vmatpush1.msra.mxu0 0.0
        %1080 = vmatprep.subr.mxu0 0.0
        %1081 = vmatpush1.msra.mxu0 0.0
        %1082 = vmatprep.subr.mxu0 0.0
        %1083 = vmatpush1.msra.mxu0 0.0
        %1084 = vmatprep.subr.mxu0 0.0
        %1085 = vmatpush1.msra.mxu0 0.0
        %1086 = vmatprep.subr.mxu0 0.0
        %1087 = vmatpush1.msra.mxu0 0.0
        %1088 = vmatprep.subr.mxu0 0.0
        %1089 = vmatpush1.msra.mxu0 0.0
        %1090 = vmatprep.subr.mxu0 0.0
        %1091 = vmatpush1.msra.mxu0 0.0
        %1092 = vmatprep.subr.mxu0 0.0
        %1093 = vmatpush1.msra.mxu0 0.0
        %1094 = vmatprep.subr.mxu0 0.0
        %1095 = vmatpush1.msra.mxu0 0.0
        %1096 = vmatprep.subr.mxu0 0.0
        %1097 = vmatpush1.msra.mxu0 0.0
        %1098 = vmatprep.subr.mxu0 0.0
        %1099 = vmatpush1.msra.mxu0 0.0
        %1100 = vmatprep.subr.mxu0 0.0
        %1101 = vmatpush1.msra.mxu0 0.0
        %1102 = vmatprep.subr.mxu0 0.0
        %1103 = vmatpush1.msra.mxu0 0.0
        %1104 = vmatprep.subr.mxu0 0.0
        %1105 = vmatpush1.msra.mxu0 0.0
        %1106 = vmatprep.subr.mxu0 0.0
        %1107 = vmatpush1.msra.mxu0 0.0
        %1108 = vmatprep.subr.mxu0 0.0
        %1109 = vmatpush1.msra.mxu0 0.0
        %1110 = vmatprep.mubr.f32.mxu0 0.0
        %1111 = vmatmul.mubr.f32.gmra.mrb[0].mxu0 %v897
        %v1112 = vpop.f32.mrb[0].mxu0
        %v1113 = vadd.f32 %v1042, %v1112
        %v1114 = vpop.f32.mrb[0].mxu0
        %v1115 = vadd.f32 %v1044, %v1114
        %1116 = vdwg.mxu0
        %s1117 = scalar_lea.vmem [#allocation6], 512
        %v1118 = vld [vmem:[%s1117] sm:$0xff]
        %v1119 = vld [vmem:[%s1117 + $0x8] sm:$0xff]
        %v1120 = vld [vmem:[%s1117 + $0x10] sm:$0xff]
        %v1121 = vld [vmem:[%s1117 + $0x18] sm:$0xff]
        %v1122 = vld [vmem:[%s1117 + $0x20] sm:$0xff]
        %v1123 = vld [vmem:[%s1117 + $0x28] sm:$0xff]
        %v1124 = vld [vmem:[%s1117 + $0x30] sm:$0xff]
        %v1125 = vld [vmem:[%s1117 + $0x38] sm:$0xff]
        %v1126 = vld [vmem:[%s1117 + $0x40] sm:$0xff]
        %v1127 = vld [vmem:[%s1117 + $0x48] sm:$0xff]
        %v1128 = vld [vmem:[%s1117 + $0x50] sm:$0xff]
        %v1129 = vld [vmem:[%s1117 + $0x58] sm:$0xff]
        %v1130 = vld [vmem:[%s1117 + $0x60] sm:$0xff]
        %v1131 = vld [vmem:[%s1117 + $0x68] sm:$0xff]
        %v1132 = vld [vmem:[%s1117 + $0x70] sm:$0xff]
        %v1133 = vld [vmem:[%s1117 + $0x78] sm:$0xff]
        %v1134 = vld [vmem:[%s1117 + $0x80] sm:$0xff]
        %v1135 = vld [vmem:[%s1117 + $0x88] sm:$0xff]
        %v1136 = vld [vmem:[%s1117 + $0x90] sm:$0xff]
        %v1137 = vld [vmem:[%s1117 + $0x98] sm:$0xff]
        %v1138 = vld [vmem:[%s1117 + $0xa0] sm:$0xff]
        %v1139 = vld [vmem:[%s1117 + $0xa8] sm:$0xff]
        %v1140 = vld [vmem:[%s1117 + $0xb0] sm:$0xff]
        %v1141 = vld [vmem:[%s1117 + $0xb8] sm:$0xff]
        %v1142 = vld [vmem:[%s1117 + $0xc0] sm:$0xff]
        %v1143 = vld [vmem:[%s1117 + $0xc8] sm:$0xff]
        %v1144 = vld [vmem:[%s1117 + $0xd0] sm:$0xff]
        %v1145 = vld [vmem:[%s1117 + $0xd8] sm:$0xff]
        %v1146 = vld [vmem:[%s1117 + $0xe0] sm:$0xff]
        %v1147 = vld [vmem:[%s1117 + $0xe8] sm:$0xff]
        %v1148 = vld [vmem:[%s1117 + $0xf0] sm:$0xff]
        %v1149 = vld [vmem:[%s1117 + $0xf8] sm:$0xff]
        %1150 = vmatprep.subr.mxu0 %v1119
        %1151 = vmatpush1.msra.mxu0 %v1118
        %1152 = vmatprep.subr.mxu0 %v1121
        %1153 = vmatpush1.msra.mxu0 %v1120
        %1154 = vmatprep.subr.mxu0 %v1123
        %1155 = vmatpush1.msra.mxu0 %v1122
        %1156 = vmatprep.subr.mxu0 %v1125
        %1157 = vmatpush1.msra.mxu0 %v1124
        %1158 = vmatprep.subr.mxu0 %v1127
        %1159 = vmatpush1.msra.mxu0 %v1126
        %1160 = vmatprep.subr.mxu0 %v1129
        %1161 = vmatpush1.msra.mxu0 %v1128
        %1162 = vmatprep.subr.mxu0 %v1131
        %1163 = vmatpush1.msra.mxu0 %v1130
        %1164 = vmatprep.subr.mxu0 %v1133
        %1165 = vmatpush1.msra.mxu0 %v1132
        %1166 = vmatprep.subr.mxu0 %v1135
        %1167 = vmatpush1.msra.mxu0 %v1134
        %1168 = vmatprep.subr.mxu0 %v1137
        %1169 = vmatpush1.msra.mxu0 %v1136
        %1170 = vmatprep.subr.mxu0 %v1139
        %1171 = vmatpush1.msra.mxu0 %v1138
        %1172 = vmatprep.subr.mxu0 %v1141
        %1173 = vmatpush1.msra.mxu0 %v1140
        %1174 = vmatprep.subr.mxu0 %v1143
        %1175 = vmatpush1.msra.mxu0 %v1142
        %1176 = vmatprep.subr.mxu0 %v1145
        %1177 = vmatpush1.msra.mxu0 %v1144
        %1178 = vmatprep.subr.mxu0 %v1147
        %1179 = vmatpush1.msra.mxu0 %v1146
        %1180 = vmatprep.subr.mxu0 %v1149
        %1181 = vmatpush1.msra.mxu0 %v1148
        %1182 = vmatprep.subr.mxu0 0.0
        %1183 = vmatpush1.msra.mxu0 0.0
        %1184 = vmatprep.subr.mxu0 0.0
        %1185 = vmatpush1.msra.mxu0 0.0
        %1186 = vmatprep.subr.mxu0 0.0
        %1187 = vmatpush1.msra.mxu0 0.0
        %1188 = vmatprep.subr.mxu0 0.0
        %1189 = vmatpush1.msra.mxu0 0.0
        %1190 = vmatprep.subr.mxu0 0.0
        %1191 = vmatpush1.msra.mxu0 0.0
        %1192 = vmatprep.subr.mxu0 0.0
        %1193 = vmatpush1.msra.mxu0 0.0
        %1194 = vmatprep.subr.mxu0 0.0
        %1195 = vmatpush1.msra.mxu0 0.0
        %1196 = vmatprep.subr.mxu0 0.0
        %1197 = vmatpush1.msra.mxu0 0.0
        %1198 = vmatprep.subr.mxu0 0.0
        %1199 = vmatpush1.msra.mxu0 0.0
        %1200 = vmatprep.subr.mxu0 0.0
        %1201 = vmatpush1.msra.mxu0 0.0
        %1202 = vmatprep.subr.mxu0 0.0
        %1203 = vmatpush1.msra.mxu0 0.0
        %1204 = vmatprep.subr.mxu0 0.0
        %1205 = vmatpush1.msra.mxu0 0.0
        %1206 = vmatprep.subr.mxu0 0.0
        %1207 = vmatpush1.msra.mxu0 0.0
        %1208 = vmatprep.subr.mxu0 0.0
        %1209 = vmatpush1.msra.mxu0 0.0
        %1210 = vmatprep.subr.mxu0 0.0
        %1211 = vmatpush1.msra.mxu0 0.0
        %1212 = vmatprep.subr.mxu0 0.0
        %1213 = vmatpush1.msra.mxu0 0.0
        %1214 = vmatprep.mubr.f32.mxu0 0.0
        %1215 = vmatmul.mubr.f32.gmra.mrb[0].mxu0 %v907
        %v1216 = vpop.f32.mrb[0].mxu0
        %v1217 = vadd.f32 0.0, %v1216
        %v1218 = vpop.f32.mrb[0].mxu0
        %v1219 = vadd.f32 0.0, %v1218
        %1220 = vdwg.mxu0
        %v1221 = vadd.f32 %v1113, %v1217
        %v1222 = vadd.f32 %v1115, %v1219
        %v1223 = vld [vmem:[#allocation7] sm:$0xff]
        %1225 = vset.pattern.permute.xlu0 0
        %1226 = vperm.xlu0 %1225, %v1223
        %v1227 = vpop.permute.xlu0 %1226
        %v1229 = vadd.f32 %v1221, %v1227
        %v1230 = vadd.f32 %v1222, %v1227
        %vm1231 = vcmp.ge.f32.partialorder %v1229, 0.0
        %vm1232 = vcmp.ge.f32.partialorder %v1230, 0.0
        %v1233 = vmul.f32 %v1229, 0.25
        %v1234 = vmul.f32 %v1230, 0.25
        %v1235 = vsel %vm1231, %v1229, %v1233
        %v1236 = vsel %vm1232, %v1230, %v1234
        %v1237 = vld [vmem:[%s697] sm:$0xff]
        %v1238 = vld [vmem:[%s697 + $0x8] sm:$0xff]
        %v1239 = vld [vmem:[%s697 + $0x10] sm:$0xff]
        %v1240 = vld [vmem:[%s697 + $0x18] sm:$0xff]
        %v1241 = vld [vmem:[%s692] sm:$0xff]
        %v1242 = vld [vmem:[%s692 + $0x8] sm:$0xff]
        %1243 = vst [vmem:[%s712] sm:$0xff] %v1235
        %vm1244 = vcmask 982016
        %1245 = vst.msk [vmem:[%s712 + $0x8] sm:$0xff] %vm1244, %v1236
        %1246 = vst [vmem:[%s712 + $0x10] sm:$0xff] %v1241
        %1247 = vst.msk [vmem:[%s712 + $0x18] sm:$0xff] %vm1244, %v1242
        %v1248 = vld [vmem:[#allocation9] sm:$0xff]
        %v1249 = vld [vmem:[#allocation9 + $0x8] sm:$0xff]
        %v1250 = vld [vmem:[#allocation9 + $0x10] sm:$0xff]
        %v1251 = vld [vmem:[#allocation10] sm:$0xff]
        %v1252 = vld [vmem:[#allocation10 + $0x8] sm:$0xff]
        %v1253 = vld [vmem:[#allocation10 + $0x10] sm:$0xff]
        %vm1254 = vcmask 130048
        %v1256 = vsel %vm1254, %v1251, 0
        %v1259 = vsel %vm1254, %v1252, 0
        %v1262 = vsel %vm1254, %v1253, 0
        %1264 = vmatprep.subr.mxu0 %v1236
        %1265 = vmatpush1.msra.mxu0 %v1235
        %1266 = vmatprep.subr.mxu0 %v1242
        %1267 = vmatpush1.msra.mxu0 %v1241
        %1268 = vmatprep.subr.mxu0 0.0
        %1269 = vmatpush1.msra.mxu0 0.0
        %1270 = vmatprep.subr.mxu0 0.0
        %1271 = vmatpush1.msra.mxu0 0.0
        %1272 = vmatprep.subr.mxu0 0.0
        %1273 = vmatpush1.msra.mxu0 0.0
        %1274 = vmatprep.subr.mxu0 0.0
        %1275 = vmatpush1.msra.mxu0 0.0
        %1276 = vmatprep.subr.mxu0 0.0
        %1277 = vmatpush1.msra.mxu0 0.0
        %1278 = vmatprep.subr.mxu0 0.0
        %1279 = vmatpush1.msra.mxu0 0.0
        %1280 = vmatprep.subr.mxu0 0.0
        %1281 = vmatpush1.msra.mxu0 0.0
        %1282 = vmatprep.subr.mxu0 0.0
        %1283 = vmatpush1.msra.mxu0 0.0
        %1284 = vmatprep.subr.mxu0 0.0
        %1285 = vmatpush1.msra.mxu0 0.0
        %1286 = vmatprep.subr.mxu0 0.0
        %1287 = vmatpush1.msra.mxu0 0.0
        %1288 = vmatprep.subr.mxu0 0.0
        %1289 = vmatpush1.msra.mxu0 0.0
        %1290 = vmatprep.subr.mxu0 0.0
        %1291 = vmatpush1.msra.mxu0 0.0
        %1292 = vmatprep.subr.mxu0 0.0
        %1293 = vmatpush1.msra.mxu0 0.0
        %1294 = vmatprep.subr.mxu0 0.0
        %1295 = vmatpush1.msra.mxu0 0.0
        %1296 = vmatprep.subr.mxu0 0.0
        %1297 = vmatpush1.msra.mxu0 0.0
        %1298 = vmatprep.subr.mxu0 0.0
        %1299 = vmatpush1.msra.mxu0 0.0
        %1300 = vmatprep.subr.mxu0 0.0
        %1301 = vmatpush1.msra.mxu0 0.0
        %1302 = vmatprep.subr.mxu0 0.0
        %1303 = vmatpush1.msra.mxu0 0.0
        %1304 = vmatprep.subr.mxu0 0.0
        %1305 = vmatpush1.msra.mxu0 0.0
        %1306 = vmatprep.subr.mxu0 0.0
        %1307 = vmatpush1.msra.mxu0 0.0
        %1308 = vmatprep.subr.mxu0 0.0
        %1309 = vmatpush1.msra.mxu0 0.0
        %1310 = vmatprep.subr.mxu0 0.0
        %1311 = vmatpush1.msra.mxu0 0.0
        %1312 = vmatprep.subr.mxu0 0.0
        %1313 = vmatpush1.msra.mxu0 0.0
        %1314 = vmatprep.subr.mxu0 0.0
        %1315 = vmatpush1.msra.mxu0 0.0
        %1316 = vmatprep.subr.mxu0 0.0
        %1317 = vmatpush1.msra.mxu0 0.0
        %1318 = vmatprep.subr.mxu0 0.0
        %1319 = vmatpush1.msra.mxu0 0.0
        %1320 = vmatprep.subr.mxu0 0.0
        %1321 = vmatpush1.msra.mxu0 0.0
        %1322 = vmatprep.subr.mxu0 0.0
        %1323 = vmatpush1.msra.mxu0 0.0
        %1324 = vmatprep.subr.mxu0 0.0
        %1325 = vmatpush1.msra.mxu0 0.0
        %1326 = vmatprep.subr.mxu0 0.0
        %1327 = vmatpush1.msra.mxu0 0.0
        %1328 = vmatprep.mubr.f32.mxu0 0.0
        %1329 = vmatmul.mubr.f32.gmra.mrb[0].mxu0 %v1256
        %v1330 = vpop.f32.mrb[0].mxu0
        %v1331 = vadd.f32 0.0, %v1330
        %v1332 = vpop.f32.mrb[0].mxu0
        %v1333 = vadd.f32 0.0, %v1332
        %1334 = vmatprep.mubr.f32.mxu0 0.0
        %1335 = vmatmul.mubr.f32.gmra.mrb[0].mxu0 %v1259
        %v1336 = vpop.f32.mrb[0].mxu0
        %v1337 = vadd.f32 0.0, %v1336
        %v1338 = vpop.f32.mrb[0].mxu0
        %v1339 = vadd.f32 0.0, %v1338
        %1340 = vmatprep.mubr.f32.mxu0 0.0
        %1341 = vmatmul.mubr.f32.gmra.mrb[0].mxu0 %v1262
        %v1342 = vpop.f32.mrb[0].mxu0
        %v1343 = vadd.f32 0.0, %v1342
        %v1344 = vpop.f32.mrb[0].mxu0
        %v1345 = vadd.f32 0.0, %v1344
        %1346 = vdwg.mxu0
        %v1348 = vsel %vm1254, %v1248, 0
        %v1351 = vsel %vm1254, %v1249, 0
        %v1354 = vsel %vm1254, %v1250, 0
        %1356 = vmatprep.subr.mxu0 %v1238
        %1357 = vmatpush1.msra.mxu0 %v1237
        %1358 = vmatprep.subr.mxu0 %v1240
        %1359 = vmatpush1.msra.mxu0 %v1239
        %1360 = vmatprep.subr.mxu0 0.0
        %1361 = vmatpush1.msra.mxu0 0.0
        %1362 = vmatprep.subr.mxu0 0.0
        %1363 = vmatpush1.msra.mxu0 0.0
        %1364 = vmatprep.subr.mxu0 0.0
        %1365 = vmatpush1.msra.mxu0 0.0
        %1366 = vmatprep.subr.mxu0 0.0
        %1367 = vmatpush1.msra.mxu0 0.0
        %1368 = vmatprep.subr.mxu0 0.0
        %1369 = vmatpush1.msra.mxu0 0.0
        %1370 = vmatprep.subr.mxu0 0.0
        %1371 = vmatpush1.msra.mxu0 0.0
        %1372 = vmatprep.subr.mxu0 0.0
        %1373 = vmatpush1.msra.mxu0 0.0
        %1374 = vmatprep.subr.mxu0 0.0
        %1375 = vmatpush1.msra.mxu0 0.0
        %1376 = vmatprep.subr.mxu0 0.0
        %1377 = vmatpush1.msra.mxu0 0.0
        %1378 = vmatprep.subr.mxu0 0.0
        %1379 = vmatpush1.msra.mxu0 0.0
        %1380 = vmatprep.subr.mxu0 0.0
        %1381 = vmatpush1.msra.mxu0 0.0
        %1382 = vmatprep.subr.mxu0 0.0
        %1383 = vmatpush1.msra.mxu0 0.0
        %1384 = vmatprep.subr.mxu0 0.0
        %1385 = vmatpush1.msra.mxu0 0.0
        %1386 = vmatprep.subr.mxu0 0.0
        %1387 = vmatpush1.msra.mxu0 0.0
        %1388 = vmatprep.subr.mxu0 0.0
        %1389 = vmatpush1.msra.mxu0 0.0
        %1390 = vmatprep.subr.mxu0 0.0
        %1391 = vmatpush1.msra.mxu0 0.0
        %1392 = vmatprep.subr.mxu0 0.0
        %1393 = vmatpush1.msra.mxu0 0.0
        %1394 = vmatprep.subr.mxu0 0.0
        %1395 = vmatpush1.msra.mxu0 0.0
        %1396 = vmatprep.subr.mxu0 0.0
        %1397 = vmatpush1.msra.mxu0 0.0
        %1398 = vmatprep.subr.mxu0 0.0
        %1399 = vmatpush1.msra.mxu0 0.0
        %1400 = vmatprep.subr.mxu0 0.0
        %1401 = vmatpush1.msra.mxu0 0.0
        %1402 = vmatprep.subr.mxu0 0.0
        %1403 = vmatpush1.msra.mxu0 0.0
        %1404 = vmatprep.subr.mxu0 0.0
        %1405 = vmatpush1.msra.mxu0 0.0
        %1406 = vmatprep.subr.mxu0 0.0
        %1407 = vmatpush1.msra.mxu0 0.0
        %1408 = vmatprep.subr.mxu0 0.0
        %1409 = vmatpush1.msra.mxu0 0.0
        %1410 = vmatprep.subr.mxu0 0.0
        %1411 = vmatpush1.msra.mxu0 0.0
        %1412 = vmatprep.subr.mxu0 0.0
        %1413 = vmatpush1.msra.mxu0 0.0
        %1414 = vmatprep.subr.mxu0 0.0
        %1415 = vmatpush1.msra.mxu0 0.0
        %1416 = vmatprep.subr.mxu0 0.0
        %1417 = vmatpush1.msra.mxu0 0.0
        %1418 = vmatprep.subr.mxu0 0.0
        %1419 = vmatpush1.msra.mxu0 0.0
        %1420 = vmatprep.mubr.f32.mxu0 0.0
        %1421 = vmatmul.mubr.f32.gmra.mrb[0].mxu0 %v1348
        %v1422 = vpop.f32.mrb[0].mxu0
        %v1423 = vadd.f32 %v1331, %v1422
        %v1424 = vpop.f32.mrb[0].mxu0
        %v1425 = vadd.f32 %v1333, %v1424
        %1426 = vmatprep.mubr.f32.mxu0 0.0
        %1427 = vmatmul.mubr.f32.gmra.mrb[0].mxu0 %v1351
        %v1428 = vpop.f32.mrb[0].mxu0
        %v1429 = vadd.f32 %v1337, %v1428
        %v1430 = vpop.f32.mrb[0].mxu0
        %v1431 = vadd.f32 %v1339, %v1430
        %1432 = vmatprep.mubr.f32.mxu0 0.0
        %1433 = vmatmul.mubr.f32.gmra.mrb[0].mxu0 %v1354
        %v1434 = vpop.f32.mrb[0].mxu0
        %v1435 = vadd.f32 %v1343, %v1434
        %v1436 = vpop.f32.mrb[0].mxu0
        %v1437 = vadd.f32 %v1345, %v1436
        %1438 = vdwg.mxu0
        %v1439 = vld [vmem:[#allocation12] sm:$0xff]
        %v1440 = vld [vmem:[#allocation12 + $0x8] sm:$0xff]
        %v1441 = vld [vmem:[#allocation12 + $0x10] sm:$0xff]
        %v1442 = vld [vmem:[#allocation12 + $0x18] sm:$0xff]
        %v1443 = vld [vmem:[#allocation12 + $0x20] sm:$0xff]
        %v1444 = vld [vmem:[#allocation12 + $0x28] sm:$0xff]
        %v1445 = vld [vmem:[#allocation12 + $0x30] sm:$0xff]
        %v1446 = vld [vmem:[#allocation12 + $0x38] sm:$0xff]
        %v1447 = vld [vmem:[#allocation12 + $0x40] sm:$0xff]
        %v1448 = vld [vmem:[#allocation12 + $0x48] sm:$0xff]
        %v1449 = vld [vmem:[#allocation12 + $0x50] sm:$0xff]
        %v1450 = vld [vmem:[#allocation12 + $0x58] sm:$0xff]
        %v1451 = vld [vmem:[#allocation12 + $0x60] sm:$0xff]
        %v1452 = vld [vmem:[#allocation12 + $0x68] sm:$0xff]
        %v1453 = vld [vmem:[#allocation12 + $0x70] sm:$0xff]
        %v1454 = vld [vmem:[#allocation12 + $0x78] sm:$0xff]
        %v1455 = vld [vmem:[#allocation12 + $0x80] sm:$0xff]
        %v1456 = vld [vmem:[#allocation12 + $0x88] sm:$0xff]
        %v1457 = vld [vmem:[#allocation12 + $0x90] sm:$0xff]
        %v1458 = vld [vmem:[#allocation12 + $0x98] sm:$0xff]
        %v1459 = vld [vmem:[#allocation12 + $0xa0] sm:$0xff]
        %v1460 = vld [vmem:[#allocation12 + $0xa8] sm:$0xff]
        %v1461 = vld [vmem:[#allocation12 + $0xb0] sm:$0xff]
        %v1462 = vld [vmem:[#allocation12 + $0xb8] sm:$0xff]
        %v1463 = vld [vmem:[#allocation12 + $0xc0] sm:$0xff]
        %v1464 = vld [vmem:[#allocation12 + $0xc8] sm:$0xff]
        %v1465 = vld [vmem:[#allocation12 + $0xd0] sm:$0xff]
        %v1466 = vld [vmem:[#allocation12 + $0xd8] sm:$0xff]
        %v1467 = vld [vmem:[#allocation12 + $0xe0] sm:$0xff]
        %v1468 = vld [vmem:[#allocation12 + $0xe8] sm:$0xff]
        %v1469 = vld [vmem:[#allocation12 + $0xf0] sm:$0xff]
        %v1470 = vld [vmem:[#allocation12 + $0xf8] sm:$0xff]
        %v1471 = vld [vmem:[#allocation12 + $0x100] sm:$0xff]
        %v1472 = vld [vmem:[#allocation12 + $0x108] sm:$0xff]
        %v1473 = vld [vmem:[#allocation12 + $0x110] sm:$0xff]
        %v1474 = vld [vmem:[#allocation12 + $0x118] sm:$0xff]
        %v1475 = vld [vmem:[#allocation12 + $0x120] sm:$0xff]
        %v1476 = vld [vmem:[#allocation12 + $0x128] sm:$0xff]
        %v1477 = vld [vmem:[#allocation12 + $0x130] sm:$0xff]
        %v1478 = vld [vmem:[#allocation12 + $0x138] sm:$0xff]
        %v1479 = vld [vmem:[#allocation12 + $0x140] sm:$0xff]
        %v1480 = vld [vmem:[#allocation12 + $0x148] sm:$0xff]
        %v1481 = vld [vmem:[#allocation12 + $0x150] sm:$0xff]
        %v1482 = vld [vmem:[#allocation12 + $0x158] sm:$0xff]
        %v1483 = vld [vmem:[#allocation12 + $0x160] sm:$0xff]
        %v1484 = vld [vmem:[#allocation12 + $0x168] sm:$0xff]
        %v1485 = vld [vmem:[#allocation12 + $0x170] sm:$0xff]
        %v1486 = vld [vmem:[#allocation12 + $0x178] sm:$0xff]
        %v1487 = vld [vmem:[#allocation12 + $0x180] sm:$0xff]
        %v1488 = vld [vmem:[#allocation12 + $0x188] sm:$0xff]
        %v1489 = vld [vmem:[#allocation12 + $0x190] sm:$0xff]
        %v1490 = vld [vmem:[#allocation12 + $0x198] sm:$0xff]
        %v1491 = vld [vmem:[#allocation12 + $0x1a0] sm:$0xff]
        %v1492 = vld [vmem:[#allocation12 + $0x1a8] sm:$0xff]
        %v1493 = vld [vmem:[#allocation12 + $0x1b0] sm:$0xff]
        %v1494 = vld [vmem:[#allocation12 + $0x1b8] sm:$0xff]
        %v1495 = vld [vmem:[#allocation12 + $0x1c0] sm:$0xff]
        %v1496 = vld [vmem:[#allocation12 + $0x1c8] sm:$0xff]
        %v1497 = vld [vmem:[#allocation12 + $0x1d0] sm:$0xff]
        %v1498 = vld [vmem:[#allocation12 + $0x1d8] sm:$0xff]
        %v1499 = vld [vmem:[#allocation12 + $0x1e0] sm:$0xff]
        %v1500 = vld [vmem:[#allocation12 + $0x1e8] sm:$0xff]
        %v1501 = vld [vmem:[#allocation12 + $0x1f0] sm:$0xff]
        %v1502 = vld [vmem:[#allocation12 + $0x1f8] sm:$0xff]
        %v1503 = vld [vmem:[#allocation12 + $0x200] sm:$0xff]
        %v1504 = vld [vmem:[#allocation12 + $0x208] sm:$0xff]
        %v1505 = vld [vmem:[#allocation12 + $0x210] sm:$0xff]
        %v1506 = vld [vmem:[#allocation12 + $0x218] sm:$0xff]
        %v1507 = vld [vmem:[#allocation12 + $0x220] sm:$0xff]
        %v1508 = vld [vmem:[#allocation12 + $0x228] sm:$0xff]
        %v1509 = vld [vmem:[#allocation12 + $0x230] sm:$0xff]
        %v1510 = vld [vmem:[#allocation12 + $0x238] sm:$0xff]
        %v1511 = vld [vmem:[#allocation12 + $0x240] sm:$0xff]
        %v1512 = vld [vmem:[#allocation12 + $0x248] sm:$0xff]
        %v1513 = vld [vmem:[#allocation12 + $0x250] sm:$0xff]
        %v1514 = vld [vmem:[#allocation12 + $0x258] sm:$0xff]
        %v1515 = vld [vmem:[#allocation12 + $0x260] sm:$0xff]
        %v1516 = vld [vmem:[#allocation12 + $0x268] sm:$0xff]
        %v1517 = vld [vmem:[#allocation12 + $0x270] sm:$0xff]
        %v1518 = vld [vmem:[#allocation12 + $0x278] sm:$0xff]
        %v1519 = vld [vmem:[#allocation12 + $0x280] sm:$0xff]
        %v1520 = vld [vmem:[#allocation12 + $0x288] sm:$0xff]
        %v1521 = vld [vmem:[#allocation12 + $0x290] sm:$0xff]
        %v1522 = vld [vmem:[#allocation12 + $0x298] sm:$0xff]
        %v1523 = vld [vmem:[#allocation12 + $0x2a0] sm:$0xff]
        %v1524 = vld [vmem:[#allocation12 + $0x2a8] sm:$0xff]
        %v1525 = vld [vmem:[#allocation12 + $0x2b0] sm:$0xff]
        %v1526 = vld [vmem:[#allocation12 + $0x2b8] sm:$0xff]
        %v1527 = vld [vmem:[#allocation12 + $0x2c0] sm:$0xff]
        %v1528 = vld [vmem:[#allocation12 + $0x2c8] sm:$0xff]
        %v1529 = vld [vmem:[#allocation12 + $0x2d0] sm:$0xff]
        %v1530 = vld [vmem:[#allocation12 + $0x2d8] sm:$0xff]
        %v1531 = vld [vmem:[#allocation12 + $0x2e0] sm:$0xff]
        %v1532 = vld [vmem:[#allocation12 + $0x2e8] sm:$0xff]
        %v1533 = vld [vmem:[#allocation12 + $0x2f0] sm:$0xff]
        %v1534 = vld [vmem:[#allocation12 + $0x2f8] sm:$0xff]
        %v1535 = vld [vmem:[#allocation12 + $0x300] sm:$0xff]
        %v1536 = vld [vmem:[#allocation12 + $0x308] sm:$0xff]
        %v1537 = vld [vmem:[#allocation12 + $0x310] sm:$0xff]
        %v1538 = vld [vmem:[#allocation12 + $0x318] sm:$0xff]
        %v1539 = vld [vmem:[#allocation12 + $0x320] sm:$0xff]
        %v1540 = vld [vmem:[#allocation12 + $0x328] sm:$0xff]
        %v1541 = vld [vmem:[#allocation12 + $0x330] sm:$0xff]
        %v1542 = vld [vmem:[#allocation12 + $0x338] sm:$0xff]
        %v1543 = vld [vmem:[#allocation12 + $0x340] sm:$0xff]
        %v1544 = vld [vmem:[#allocation12 + $0x348] sm:$0xff]
        %v1545 = vld [vmem:[#allocation12 + $0x350] sm:$0xff]
        %v1546 = vld [vmem:[#allocation12 + $0x358] sm:$0xff]
        %v1547 = vld [vmem:[#allocation12 + $0x360] sm:$0xff]
        %v1548 = vld [vmem:[#allocation12 + $0x368] sm:$0xff]
        %v1549 = vld [vmem:[#allocation12 + $0x370] sm:$0xff]
        %v1550 = vld [vmem:[#allocation12 + $0x378] sm:$0xff]
        %v1551 = vld [vmem:[#allocation12 + $0x380] sm:$0xff]
        %v1552 = vld [vmem:[#allocation12 + $0x388] sm:$0xff]
        %v1553 = vld [vmem:[#allocation12 + $0x390] sm:$0xff]
        %v1554 = vld [vmem:[#allocation12 + $0x398] sm:$0xff]
        %v1555 = vld [vmem:[#allocation12 + $0x3a0] sm:$0xff]
        %v1556 = vld [vmem:[#allocation12 + $0x3a8] sm:$0xff]
        %v1557 = vld [vmem:[#allocation12 + $0x3b0] sm:$0xff]
        %v1558 = vld [vmem:[#allocation12 + $0x3b8] sm:$0xff]
        %v1559 = vld [vmem:[#allocation12 + $0x3c0] sm:$0xff]
        %v1560 = vld [vmem:[#allocation12 + $0x3c8] sm:$0xff]
        %v1561 = vld [vmem:[#allocation12 + $0x3d0] sm:$0xff]
        %v1562 = vld [vmem:[#allocation12 + $0x3d8] sm:$0xff]
        %s1563 = scalar_lea.vmem [#allocation12], 992
        %v1564 = vld [vmem:[%s1563] sm:$0xff]
        %v1565 = vld [vmem:[%s1563 + $0x8] sm:$0xff]
        %v1566 = vld [vmem:[%s1563 + $0x10] sm:$0xff]
        %v1567 = vld [vmem:[%s1563 + $0x18] sm:$0xff]
        %v1568 = vld [vmem:[%s1563 + $0x20] sm:$0xff]
        %v1569 = vld [vmem:[%s1563 + $0x28] sm:$0xff]
        %v1570 = vld [vmem:[%s1563 + $0x30] sm:$0xff]
        %v1571 = vld [vmem:[%s1563 + $0x38] sm:$0xff]
        %v1572 = vld [vmem:[%s1563 + $0x40] sm:$0xff]
        %v1573 = vld [vmem:[%s1563 + $0x48] sm:$0xff]
        %v1574 = vld [vmem:[%s1563 + $0x50] sm:$0xff]
        %v1575 = vld [vmem:[%s1563 + $0x58] sm:$0xff]
        %v1576 = vld [vmem:[%s1563 + $0x60] sm:$0xff]
        %v1577 = vld [vmem:[%s1563 + $0x68] sm:$0xff]
        %v1578 = vld [vmem:[%s1563 + $0x70] sm:$0xff]
        %v1579 = vld [vmem:[%s1563 + $0x78] sm:$0xff]
        %v1580 = vld [vmem:[%s1563 + $0x80] sm:$0xff]
        %v1581 = vld [vmem:[%s1563 + $0x88] sm:$0xff]
        %v1582 = vld [vmem:[%s1563 + $0x90] sm:$0xff]
        %v1583 = vld [vmem:[%s1563 + $0x98] sm:$0xff]
        %v1584 = vld [vmem:[%s1563 + $0xa0] sm:$0xff]
        %v1585 = vld [vmem:[%s1563 + $0xa8] sm:$0xff]
        %v1586 = vld [vmem:[%s1563 + $0xb0] sm:$0xff]
        %v1587 = vld [vmem:[%s1563 + $0xb8] sm:$0xff]
        %v1588 = vld [vmem:[%s1563 + $0xc0] sm:$0xff]
        %v1589 = vld [vmem:[%s1563 + $0xc8] sm:$0xff]
        %v1590 = vld [vmem:[%s1563 + $0xd0] sm:$0xff]
        %v1591 = vld [vmem:[%s1563 + $0xd8] sm:$0xff]
        %v1592 = vld [vmem:[%s1563 + $0xe0] sm:$0xff]
        %v1593 = vld [vmem:[%s1563 + $0xe8] sm:$0xff]
        %v1594 = vld [vmem:[%s1563 + $0xf0] sm:$0xff]
        %v1595 = vld [vmem:[%s1563 + $0xf8] sm:$0xff]
        %v1596 = vld [vmem:[%s1563 + $0x100] sm:$0xff]
        %v1597 = vld [vmem:[%s1563 + $0x108] sm:$0xff]
        %v1598 = vld [vmem:[%s1563 + $0x110] sm:$0xff]
        %v1599 = vld [vmem:[%s1563 + $0x118] sm:$0xff]
        %v1600 = vld [vmem:[%s1563 + $0x120] sm:$0xff]
        %v1601 = vld [vmem:[%s1563 + $0x128] sm:$0xff]
        %v1602 = vld [vmem:[%s1563 + $0x130] sm:$0xff]
        %v1603 = vld [vmem:[%s1563 + $0x138] sm:$0xff]
        %v1604 = vld [vmem:[%s1563 + $0x140] sm:$0xff]
        %v1605 = vld [vmem:[%s1563 + $0x148] sm:$0xff]
        %v1606 = vld [vmem:[%s1563 + $0x150] sm:$0xff]
        %v1607 = vld [vmem:[%s1563 + $0x158] sm:$0xff]
        %v1608 = vld [vmem:[%s1563 + $0x160] sm:$0xff]
        %v1609 = vld [vmem:[%s1563 + $0x168] sm:$0xff]
        %v1610 = vld [vmem:[%s1563 + $0x170] sm:$0xff]
        %v1611 = vld [vmem:[%s1563 + $0x178] sm:$0xff]
        %v1612 = vld [vmem:[%s1563 + $0x180] sm:$0xff]
        %v1613 = vld [vmem:[%s1563 + $0x188] sm:$0xff]
        %v1614 = vld [vmem:[%s1563 + $0x190] sm:$0xff]
        %v1615 = vld [vmem:[%s1563 + $0x198] sm:$0xff]
        %v1616 = vld [vmem:[%s1563 + $0x1a0] sm:$0xff]
        %v1617 = vld [vmem:[%s1563 + $0x1a8] sm:$0xff]
        %v1618 = vld [vmem:[%s1563 + $0x1b0] sm:$0xff]
        %v1619 = vld [vmem:[%s1563 + $0x1b8] sm:$0xff]
        %v1620 = vld [vmem:[%s1563 + $0x1c0] sm:$0xff]
        %v1621 = vld [vmem:[%s1563 + $0x1c8] sm:$0xff]
        %v1622 = vld [vmem:[%s1563 + $0x1d0] sm:$0xff]
        %v1623 = vld [vmem:[%s1563 + $0x1d8] sm:$0xff]
        %v1624 = vld [vmem:[%s1563 + $0x1e0] sm:$0xff]
        %v1625 = vld [vmem:[%s1563 + $0x1e8] sm:$0xff]
        %v1626 = vld [vmem:[%s1563 + $0x1f0] sm:$0xff]
        %v1627 = vld [vmem:[%s1563 + $0x1f8] sm:$0xff]
        %v1628 = vld [vmem:[%s1563 + $0x200] sm:$0xff]
        %v1629 = vld [vmem:[%s1563 + $0x208] sm:$0xff]
        %v1630 = vld [vmem:[%s1563 + $0x210] sm:$0xff]
        %v1631 = vld [vmem:[%s1563 + $0x218] sm:$0xff]
        %v1632 = vld [vmem:[%s1563 + $0x220] sm:$0xff]
        %v1633 = vld [vmem:[%s1563 + $0x228] sm:$0xff]
        %v1634 = vld [vmem:[%s1563 + $0x230] sm:$0xff]
        %v1635 = vld [vmem:[%s1563 + $0x238] sm:$0xff]
        %v1636 = vld [vmem:[%s1563 + $0x240] sm:$0xff]
        %v1637 = vld [vmem:[%s1563 + $0x248] sm:$0xff]
        %v1638 = vld [vmem:[%s1563 + $0x250] sm:$0xff]
        %v1639 = vld [vmem:[%s1563 + $0x258] sm:$0xff]
        %v1640 = vld [vmem:[%s1563 + $0x260] sm:$0xff]
        %v1641 = vld [vmem:[%s1563 + $0x268] sm:$0xff]
        %v1642 = vld [vmem:[%s1563 + $0x270] sm:$0xff]
        %v1643 = vld [vmem:[%s1563 + $0x278] sm:$0xff]
        %v1644 = vld [vmem:[%s1563 + $0x280] sm:$0xff]
        %v1645 = vld [vmem:[%s1563 + $0x288] sm:$0xff]
        %v1646 = vld [vmem:[%s1563 + $0x290] sm:$0xff]
        %v1647 = vld [vmem:[%s1563 + $0x298] sm:$0xff]
        %v1648 = vld [vmem:[%s1563 + $0x2a0] sm:$0xff]
        %v1649 = vld [vmem:[%s1563 + $0x2a8] sm:$0xff]
        %v1650 = vld [vmem:[%s1563 + $0x2b0] sm:$0xff]
        %v1651 = vld [vmem:[%s1563 + $0x2b8] sm:$0xff]
        %v1652 = vld [vmem:[%s1563 + $0x2c0] sm:$0xff]
        %v1653 = vld [vmem:[%s1563 + $0x2c8] sm:$0xff]
        %v1654 = vld [vmem:[%s1563 + $0x2d0] sm:$0xff]
        %v1655 = vld [vmem:[%s1563 + $0x2d8] sm:$0xff]
        %v1656 = vld [vmem:[%s1563 + $0x2e0] sm:$0xff]
        %v1657 = vld [vmem:[%s1563 + $0x2e8] sm:$0xff]
        %v1658 = vld [vmem:[%s1563 + $0x2f0] sm:$0xff]
        %v1659 = vld [vmem:[%s1563 + $0x2f8] sm:$0xff]
        %v1660 = vld [vmem:[%s1563 + $0x300] sm:$0xff]
        %v1661 = vld [vmem:[%s1563 + $0x308] sm:$0xff]
        %v1662 = vld [vmem:[%s1563 + $0x310] sm:$0xff]
        %v1663 = vld [vmem:[%s1563 + $0x318] sm:$0xff]
        %v1664 = vld [vmem:[%s1563 + $0x320] sm:$0xff]
        %v1665 = vld [vmem:[%s1563 + $0x328] sm:$0xff]
        %v1666 = vld [vmem:[%s1563 + $0x330] sm:$0xff]
        %v1667 = vld [vmem:[%s1563 + $0x338] sm:$0xff]
        %v1668 = vld [vmem:[%s1563 + $0x340] sm:$0xff]
        %v1669 = vld [vmem:[%s1563 + $0x348] sm:$0xff]
        %v1670 = vld [vmem:[%s1563 + $0x350] sm:$0xff]
        %v1671 = vld [vmem:[%s1563 + $0x358] sm:$0xff]
        %v1672 = vld [vmem:[%s1563 + $0x360] sm:$0xff]
        %v1673 = vld [vmem:[%s1563 + $0x368] sm:$0xff]
        %v1674 = vld [vmem:[%s1563 + $0x370] sm:$0xff]
        %v1675 = vld [vmem:[%s1563 + $0x378] sm:$0xff]
        %v1676 = vld [vmem:[%s1563 + $0x380] sm:$0xff]
        %v1677 = vld [vmem:[%s1563 + $0x388] sm:$0xff]
        %v1678 = vld [vmem:[%s1563 + $0x390] sm:$0xff]
        %v1679 = vld [vmem:[%s1563 + $0x398] sm:$0xff]
        %v1680 = vld [vmem:[%s1563 + $0x3a0] sm:$0xff]
        %v1681 = vld [vmem:[%s1563 + $0x3a8] sm:$0xff]
        %v1682 = vld [vmem:[%s1563 + $0x3b0] sm:$0xff]
        %v1683 = vld [vmem:[%s1563 + $0x3b8] sm:$0xff]
        %v1684 = vld [vmem:[%s1563 + $0x3c0] sm:$0xff]
        %v1685 = vld [vmem:[%s1563 + $0x3c8] sm:$0xff]
        %v1686 = vld [vmem:[%s1563 + $0x3d0] sm:$0xff]
        %v1687 = vld [vmem:[%s1563 + $0x3d8] sm:$0xff]
        %v1689 = vsel %vm1244, %v1431, 0
        %1691 = vmatprep.subr.mxu0 %v1565
        %1692 = vmatpush1.msra.mxu0 %v1564
        %1693 = vmatprep.subr.mxu0 %v1569
        %1694 = vmatpush1.msra.mxu0 %v1568
        %1695 = vmatprep.subr.mxu0 %v1573
        %1696 = vmatpush1.msra.mxu0 %v1572
        %1697 = vmatprep.subr.mxu0 %v1577
        %1698 = vmatpush1.msra.mxu0 %v1576
        %1699 = vmatprep.subr.mxu0 %v1581
        %1700 = vmatpush1.msra.mxu0 %v1580
        %1701 = vmatprep.subr.mxu0 %v1585
        %1702 = vmatpush1.msra.mxu0 %v1584
        %1703 = vmatprep.subr.mxu0 %v1589
        %1704 = vmatpush1.msra.mxu0 %v1588
        %1705 = vmatprep.subr.mxu0 %v1593
        %1706 = vmatpush1.msra.mxu0 %v1592
        %1707 = vmatprep.subr.mxu0 %v1597
        %1708 = vmatpush1.msra.mxu0 %v1596
        %1709 = vmatprep.subr.mxu0 %v1601
        %1710 = vmatpush1.msra.mxu0 %v1600
        %1711 = vmatprep.subr.mxu0 %v1605
        %1712 = vmatpush1.msra.mxu0 %v1604
        %1713 = vmatprep.subr.mxu0 %v1609
        %1714 = vmatpush1.msra.mxu0 %v1608
        %1715 = vmatprep.subr.mxu0 %v1613
        %1716 = vmatpush1.msra.mxu0 %v1612
        %1717 = vmatprep.subr.mxu0 %v1617
        %1718 = vmatpush1.msra.mxu0 %v1616
        %1719 = vmatprep.subr.mxu0 %v1621
        %1720 = vmatpush1.msra.mxu0 %v1620
        %1721 = vmatprep.subr.mxu0 %v1625
        %1722 = vmatpush1.msra.mxu0 %v1624
        %1723 = vmatprep.subr.mxu0 %v1629
        %1724 = vmatpush1.msra.mxu0 %v1628
        %1725 = vmatprep.subr.mxu0 %v1633
        %1726 = vmatpush1.msra.mxu0 %v1632
        %1727 = vmatprep.subr.mxu0 %v1637
        %1728 = vmatpush1.msra.mxu0 %v1636
        %1729 = vmatprep.subr.mxu0 %v1641
        %1730 = vmatpush1.msra.mxu0 %v1640
        %1731 = vmatprep.subr.mxu0 %v1645
        %1732 = vmatpush1.msra.mxu0 %v1644
        %1733 = vmatprep.subr.mxu0 %v1649
        %1734 = vmatpush1.msra.mxu0 %v1648
        %1735 = vmatprep.subr.mxu0 %v1653
        %1736 = vmatpush1.msra.mxu0 %v1652
        %1737 = vmatprep.subr.mxu0 %v1657
        %1738 = vmatpush1.msra.mxu0 %v1656
        %1739 = vmatprep.subr.mxu0 %v1661
        %1740 = vmatpush1.msra.mxu0 %v1660
        %1741 = vmatprep.subr.mxu0 %v1665
        %1742 = vmatpush1.msra.mxu0 %v1664
        %1743 = vmatprep.subr.mxu0 %v1669
        %1744 = vmatpush1.msra.mxu0 %v1668
        %1745 = vmatprep.subr.mxu0 %v1673
        %1746 = vmatpush1.msra.mxu0 %v1672
        %1747 = vmatprep.subr.mxu0 %v1677
        %1748 = vmatpush1.msra.mxu0 %v1676
        %1749 = vmatprep.subr.mxu0 %v1681
        %1750 = vmatpush1.msra.mxu0 %v1680
        %1751 = vmatprep.subr.mxu0 %v1685
        %1752 = vmatpush1.msra.mxu0 %v1684
        %1753 = vmatprep.subr.mxu0 0.0
        %1754 = vmatpush1.msra.mxu0 0.0
        %1755 = vmatprep.mubr.f32.mxu0 %v1689
        %1756 = vmatmul.mubr.f32.gmra.mrb[0].mxu0 %v1429
        %v1757 = vpop.f32.mrb[0].mxu0
        %v1758 = vadd.f32 0.0, %v1757
        %v1759 = vpop.f32.mrb[0].mxu0
        %v1760 = vadd.f32 0.0, %v1759
        %1761 = vdwg.mxu0
        %1762 = vmatprep.subr.mxu0 %v1567
        %1763 = vmatpush1.msra.mxu0 %v1566
        %1764 = vmatprep.subr.mxu0 %v1571
        %1765 = vmatpush1.msra.mxu0 %v1570
        %1766 = vmatprep.subr.mxu0 %v1575
        %1767 = vmatpush1.msra.mxu0 %v1574
        %1768 = vmatprep.subr.mxu0 %v1579
        %1769 = vmatpush1.msra.mxu0 %v1578
        %1770 = vmatprep.subr.mxu0 %v1583
        %1771 = vmatpush1.msra.mxu0 %v1582
        %1772 = vmatprep.subr.mxu0 %v1587
        %1773 = vmatpush1.msra.mxu0 %v1586
        %1774 = vmatprep.subr.mxu0 %v1591
        %1775 = vmatpush1.msra.mxu0 %v1590
        %1776 = vmatprep.subr.mxu0 %v1595
        %1777 = vmatpush1.msra.mxu0 %v1594
        %1778 = vmatprep.subr.mxu0 %v1599
        %1779 = vmatpush1.msra.mxu0 %v1598
        %1780 = vmatprep.subr.mxu0 %v1603
        %1781 = vmatpush1.msra.mxu0 %v1602
        %1782 = vmatprep.subr.mxu0 %v1607
        %1783 = vmatpush1.msra.mxu0 %v1606
        %1784 = vmatprep.subr.mxu0 %v1611
        %1785 = vmatpush1.msra.mxu0 %v1610
        %1786 = vmatprep.subr.mxu0 %v1615
        %1787 = vmatpush1.msra.mxu0 %v1614
        %1788 = vmatprep.subr.mxu0 %v1619
        %1789 = vmatpush1.msra.mxu0 %v1618
        %1790 = vmatprep.subr.mxu0 %v1623
        %1791 = vmatpush1.msra.mxu0 %v1622
        %1792 = vmatprep.subr.mxu0 %v1627
        %1793 = vmatpush1.msra.mxu0 %v1626
        %1794 = vmatprep.subr.mxu0 %v1631
        %1795 = vmatpush1.msra.mxu0 %v1630
        %1796 = vmatprep.subr.mxu0 %v1635
        %1797 = vmatpush1.msra.mxu0 %v1634
        %1798 = vmatprep.subr.mxu0 %v1639
        %1799 = vmatpush1.msra.mxu0 %v1638
        %1800 = vmatprep.subr.mxu0 %v1643
        %1801 = vmatpush1.msra.mxu0 %v1642
        %1802 = vmatprep.subr.mxu0 %v1647
        %1803 = vmatpush1.msra.mxu0 %v1646
        %1804 = vmatprep.subr.mxu0 %v1651
        %1805 = vmatpush1.msra.mxu0 %v1650
        %1806 = vmatprep.subr.mxu0 %v1655
        %1807 = vmatpush1.msra.mxu0 %v1654
        %1808 = vmatprep.subr.mxu0 %v1659
        %1809 = vmatpush1.msra.mxu0 %v1658
        %1810 = vmatprep.subr.mxu0 %v1663
        %1811 = vmatpush1.msra.mxu0 %v1662
        %1812 = vmatprep.subr.mxu0 %v1667
        %1813 = vmatpush1.msra.mxu0 %v1666
        %1814 = vmatprep.subr.mxu0 %v1671
        %1815 = vmatpush1.msra.mxu0 %v1670
        %1816 = vmatprep.subr.mxu0 %v1675
        %1817 = vmatpush1.msra.mxu0 %v1674
        %1818 = vmatprep.subr.mxu0 %v1679
        %1819 = vmatpush1.msra.mxu0 %v1678
        %1820 = vmatprep.subr.mxu0 %v1683
        %1821 = vmatpush1.msra.mxu0 %v1682
        %1822 = vmatprep.subr.mxu0 %v1687
        %1823 = vmatpush1.msra.mxu0 %v1686
        %1824 = vmatprep.subr.mxu0 0.0
        %1825 = vmatpush1.msra.mxu0 0.0
        %1826 = vmatprep.mubr.f32.mxu0 %v1689
        %1827 = vmatmul.mubr.f32.gmra.mrb[0].mxu0 %v1429
        %v1828 = vpop.f32.mrb[0].mxu0
        %v1829 = vadd.f32 0.0, %v1828
        %v1830 = vpop.f32.mrb[0].mxu0
        %v1831 = vadd.f32 0.0, %v1830
        %1832 = vdwg.mxu0
        %v1834 = vsel %vm1244, %v1425, 0
        %1836 = vmatprep.subr.mxu0 %v1440
        %1837 = vmatpush1.msra.mxu0 %v1439
        %1838 = vmatprep.subr.mxu0 %v1444
        %1839 = vmatpush1.msra.mxu0 %v1443
        %1840 = vmatprep.subr.mxu0 %v1448
        %1841 = vmatpush1.msra.mxu0 %v1447
        %1842 = vmatprep.subr.mxu0 %v1452
        %1843 = vmatpush1.msra.mxu0 %v1451
        %1844 = vmatprep.subr.mxu0 %v1456
        %1845 = vmatpush1.msra.mxu0 %v1455
        %1846 = vmatprep.subr.mxu0 %v1460
        %1847 = vmatpush1.msra.mxu0 %v1459
        %1848 = vmatprep.subr.mxu0 %v1464
        %1849 = vmatpush1.msra.mxu0 %v1463
        %1850 = vmatprep.subr.mxu0 %v1468
        %1851 = vmatpush1.msra.mxu0 %v1467
        %1852 = vmatprep.subr.mxu0 %v1472
        %1853 = vmatpush1.msra.mxu0 %v1471
        %1854 = vmatprep.subr.mxu0 %v1476
        %1855 = vmatpush1.msra.mxu0 %v1475
        %1856 = vmatprep.subr.mxu0 %v1480
        %1857 = vmatpush1.msra.mxu0 %v1479
        %1858 = vmatprep.subr.mxu0 %v1484
        %1859 = vmatpush1.msra.mxu0 %v1483
        %1860 = vmatprep.subr.mxu0 %v1488
        %1861 = vmatpush1.msra.mxu0 %v1487
        %1862 = vmatprep.subr.mxu0 %v1492
        %1863 = vmatpush1.msra.mxu0 %v1491
        %1864 = vmatprep.subr.mxu0 %v1496
        %1865 = vmatpush1.msra.mxu0 %v1495
        %1866 = vmatprep.subr.mxu0 %v1500
        %1867 = vmatpush1.msra.mxu0 %v1499
        %1868 = vmatprep.subr.mxu0 %v1504
        %1869 = vmatpush1.msra.mxu0 %v1503
        %1870 = vmatprep.subr.mxu0 %v1508
        %1871 = vmatpush1.msra.mxu0 %v1507
        %1872 = vmatprep.subr.mxu0 %v1512
        %1873 = vmatpush1.msra.mxu0 %v1511
        %1874 = vmatprep.subr.mxu0 %v1516
        %1875 = vmatpush1.msra.mxu0 %v1515
        %1876 = vmatprep.subr.mxu0 %v1520
        %1877 = vmatpush1.msra.mxu0 %v1519
        %1878 = vmatprep.subr.mxu0 %v1524
        %1879 = vmatpush1.msra.mxu0 %v1523
        %1880 = vmatprep.subr.mxu0 %v1528
        %1881 = vmatpush1.msra.mxu0 %v1527
        %1882 = vmatprep.subr.mxu0 %v1532
        %1883 = vmatpush1.msra.mxu0 %v1531
        %1884 = vmatprep.subr.mxu0 %v1536
        %1885 = vmatpush1.msra.mxu0 %v1535
        %1886 = vmatprep.subr.mxu0 %v1540
        %1887 = vmatpush1.msra.mxu0 %v1539
        %1888 = vmatprep.subr.mxu0 %v1544
        %1889 = vmatpush1.msra.mxu0 %v1543
        %1890 = vmatprep.subr.mxu0 %v1548
        %1891 = vmatpush1.msra.mxu0 %v1547
        %1892 = vmatprep.subr.mxu0 %v1552
        %1893 = vmatpush1.msra.mxu0 %v1551
        %1894 = vmatprep.subr.mxu0 %v1556
        %1895 = vmatpush1.msra.mxu0 %v1555
        %1896 = vmatprep.subr.mxu0 %v1560
        %1897 = vmatpush1.msra.mxu0 %v1559
        %1898 = vmatprep.subr.mxu0 0.0
        %1899 = vmatpush1.msra.mxu0 0.0
        %1900 = vmatprep.mubr.f32.mxu0 %v1834
        %1901 = vmatmul.mubr.f32.gmra.mrb[0].mxu0 %v1423
        %v1902 = vpop.f32.mrb[0].mxu0
        %v1903 = vadd.f32 %v1758, %v1902
        %v1904 = vpop.f32.mrb[0].mxu0
        %v1905 = vadd.f32 %v1760, %v1904
        %1906 = vdwg.mxu0
        %1907 = vmatprep.subr.mxu0 %v1442
        %1908 = vmatpush1.msra.mxu0 %v1441
        %1909 = vmatprep.subr.mxu0 %v1446
        %1910 = vmatpush1.msra.mxu0 %v1445
        %1911 = vmatprep.subr.mxu0 %v1450
        %1912 = vmatpush1.msra.mxu0 %v1449
        %1913 = vmatprep.subr.mxu0 %v1454
        %1914 = vmatpush1.msra.mxu0 %v1453
        %1915 = vmatprep.subr.mxu0 %v1458
        %1916 = vmatpush1.msra.mxu0 %v1457
        %1917 = vmatprep.subr.mxu0 %v1462
        %1918 = vmatpush1.msra.mxu0 %v1461
        %1919 = vmatprep.subr.mxu0 %v1466
        %1920 = vmatpush1.msra.mxu0 %v1465
        %1921 = vmatprep.subr.mxu0 %v1470
        %1922 = vmatpush1.msra.mxu0 %v1469
        %1923 = vmatprep.subr.mxu0 %v1474
        %1924 = vmatpush1.msra.mxu0 %v1473
        %1925 = vmatprep.subr.mxu0 %v1478
        %1926 = vmatpush1.msra.mxu0 %v1477
        %1927 = vmatprep.subr.mxu0 %v1482
        %1928 = vmatpush1.msra.mxu0 %v1481
        %1929 = vmatprep.subr.mxu0 %v1486
        %1930 = vmatpush1.msra.mxu0 %v1485
        %1931 = vmatprep.subr.mxu0 %v1490
        %1932 = vmatpush1.msra.mxu0 %v1489
        %1933 = vmatprep.subr.mxu0 %v1494
        %1934 = vmatpush1.msra.mxu0 %v1493
        %1935 = vmatprep.subr.mxu0 %v1498
        %1936 = vmatpush1.msra.mxu0 %v1497
        %1937 = vmatprep.subr.mxu0 %v1502
        %1938 = vmatpush1.msra.mxu0 %v1501
        %1939 = vmatprep.subr.mxu0 %v1506
        %1940 = vmatpush1.msra.mxu0 %v1505
        %1941 = vmatprep.subr.mxu0 %v1510
        %1942 = vmatpush1.msra.mxu0 %v1509
        %1943 = vmatprep.subr.mxu0 %v1514
        %1944 = vmatpush1.msra.mxu0 %v1513
        %1945 = vmatprep.subr.mxu0 %v1518
        %1946 = vmatpush1.msra.mxu0 %v1517
        %1947 = vmatprep.subr.mxu0 %v1522
        %1948 = vmatpush1.msra.mxu0 %v1521
        %1949 = vmatprep.subr.mxu0 %v1526
        %1950 = vmatpush1.msra.mxu0 %v1525
        %1951 = vmatprep.subr.mxu0 %v1530
        %1952 = vmatpush1.msra.mxu0 %v1529
        %1953 = vmatprep.subr.mxu0 %v1534
        %1954 = vmatpush1.msra.mxu0 %v1533
        %1955 = vmatprep.subr.mxu0 %v1538
        %1956 = vmatpush1.msra.mxu0 %v1537
        %1957 = vmatprep.subr.mxu0 %v1542
        %1958 = vmatpush1.msra.mxu0 %v1541
        %1959 = vmatprep.subr.mxu0 %v1546
        %1960 = vmatpush1.msra.mxu0 %v1545
        %1961 = vmatprep.subr.mxu0 %v1550
        %1962 = vmatpush1.msra.mxu0 %v1549
        %1963 = vmatprep.subr.mxu0 %v1554
        %1964 = vmatpush1.msra.mxu0 %v1553
        %1965 = vmatprep.subr.mxu0 %v1558
        %1966 = vmatpush1.msra.mxu0 %v1557
        %1967 = vmatprep.subr.mxu0 %v1562
        %1968 = vmatpush1.msra.mxu0 %v1561
        %1969 = vmatprep.subr.mxu0 0.0
        %1970 = vmatpush1.msra.mxu0 0.0
        %1971 = vmatprep.mubr.f32.mxu0 %v1834
        %1972 = vmatmul.mubr.f32.gmra.mrb[0].mxu0 %v1423
        %v1973 = vpop.f32.mrb[0].mxu0
        %v1974 = vadd.f32 %v1829, %v1973
        %v1975 = vpop.f32.mrb[0].mxu0
        %v1976 = vadd.f32 %v1831, %v1975
        %1977 = vdwg.mxu0
        %s1978 = scalar_lea.vmem [#allocation12], 1984
        %v1979 = vld [vmem:[%s1978] sm:$0xff]
        %v1980 = vld [vmem:[%s1978 + $0x8] sm:$0xff]
        %v1981 = vld [vmem:[%s1978 + $0x10] sm:$0xff]
        %v1982 = vld [vmem:[%s1978 + $0x18] sm:$0xff]
        %v1983 = vld [vmem:[%s1978 + $0x20] sm:$0xff]
        %v1984 = vld [vmem:[%s1978 + $0x28] sm:$0xff]
        %v1985 = vld [vmem:[%s1978 + $0x30] sm:$0xff]
        %v1986 = vld [vmem:[%s1978 + $0x38] sm:$0xff]
        %v1987 = vld [vmem:[%s1978 + $0x40] sm:$0xff]
        %v1988 = vld [vmem:[%s1978 + $0x48] sm:$0xff]
        %v1989 = vld [vmem:[%s1978 + $0x50] sm:$0xff]
        %v1990 = vld [vmem:[%s1978 + $0x58] sm:$0xff]
        %v1991 = vld [vmem:[%s1978 + $0x60] sm:$0xff]
        %v1992 = vld [vmem:[%s1978 + $0x68] sm:$0xff]
        %v1993 = vld [vmem:[%s1978 + $0x70] sm:$0xff]
        %v1994 = vld [vmem:[%s1978 + $0x78] sm:$0xff]
        %v1995 = vld [vmem:[%s1978 + $0x80] sm:$0xff]
        %v1996 = vld [vmem:[%s1978 + $0x88] sm:$0xff]
        %v1997 = vld [vmem:[%s1978 + $0x90] sm:$0xff]
        %v1998 = vld [vmem:[%s1978 + $0x98] sm:$0xff]
        %v1999 = vld [vmem:[%s1978 + $0xa0] sm:$0xff]
        %v2000 = vld [vmem:[%s1978 + $0xa8] sm:$0xff]
        %v2001 = vld [vmem:[%s1978 + $0xb0] sm:$0xff]
        %v2002 = vld [vmem:[%s1978 + $0xb8] sm:$0xff]
        %v2003 = vld [vmem:[%s1978 + $0xc0] sm:$0xff]
        %v2004 = vld [vmem:[%s1978 + $0xc8] sm:$0xff]
        %v2005 = vld [vmem:[%s1978 + $0xd0] sm:$0xff]
        %v2006 = vld [vmem:[%s1978 + $0xd8] sm:$0xff]
        %v2007 = vld [vmem:[%s1978 + $0xe0] sm:$0xff]
        %v2008 = vld [vmem:[%s1978 + $0xe8] sm:$0xff]
        %v2009 = vld [vmem:[%s1978 + $0xf0] sm:$0xff]
        %v2010 = vld [vmem:[%s1978 + $0xf8] sm:$0xff]
        %v2011 = vld [vmem:[%s1978 + $0x100] sm:$0xff]
        %v2012 = vld [vmem:[%s1978 + $0x108] sm:$0xff]
        %v2013 = vld [vmem:[%s1978 + $0x110] sm:$0xff]
        %v2014 = vld [vmem:[%s1978 + $0x118] sm:$0xff]
        %v2015 = vld [vmem:[%s1978 + $0x120] sm:$0xff]
        %v2016 = vld [vmem:[%s1978 + $0x128] sm:$0xff]
        %v2017 = vld [vmem:[%s1978 + $0x130] sm:$0xff]
        %v2018 = vld [vmem:[%s1978 + $0x138] sm:$0xff]
        %v2019 = vld [vmem:[%s1978 + $0x140] sm:$0xff]
        %v2020 = vld [vmem:[%s1978 + $0x148] sm:$0xff]
        %v2021 = vld [vmem:[%s1978 + $0x150] sm:$0xff]
        %v2022 = vld [vmem:[%s1978 + $0x158] sm:$0xff]
        %v2023 = vld [vmem:[%s1978 + $0x160] sm:$0xff]
        %v2024 = vld [vmem:[%s1978 + $0x168] sm:$0xff]
        %v2025 = vld [vmem:[%s1978 + $0x170] sm:$0xff]
        %v2026 = vld [vmem:[%s1978 + $0x178] sm:$0xff]
        %v2027 = vld [vmem:[%s1978 + $0x180] sm:$0xff]
        %v2028 = vld [vmem:[%s1978 + $0x188] sm:$0xff]
        %v2029 = vld [vmem:[%s1978 + $0x190] sm:$0xff]
        %v2030 = vld [vmem:[%s1978 + $0x198] sm:$0xff]
        %v2031 = vld [vmem:[%s1978 + $0x1a0] sm:$0xff]
        %v2032 = vld [vmem:[%s1978 + $0x1a8] sm:$0xff]
        %v2033 = vld [vmem:[%s1978 + $0x1b0] sm:$0xff]
        %v2034 = vld [vmem:[%s1978 + $0x1b8] sm:$0xff]
        %v2035 = vld [vmem:[%s1978 + $0x1c0] sm:$0xff]
        %v2036 = vld [vmem:[%s1978 + $0x1c8] sm:$0xff]
        %v2037 = vld [vmem:[%s1978 + $0x1d0] sm:$0xff]
        %v2038 = vld [vmem:[%s1978 + $0x1d8] sm:$0xff]
        %v2039 = vld [vmem:[%s1978 + $0x1e0] sm:$0xff]
        %v2040 = vld [vmem:[%s1978 + $0x1e8] sm:$0xff]
        %v2041 = vld [vmem:[%s1978 + $0x1f0] sm:$0xff]
        %v2042 = vld [vmem:[%s1978 + $0x1f8] sm:$0xff]
        %v2043 = vld [vmem:[%s1978 + $0x200] sm:$0xff]
        %v2044 = vld [vmem:[%s1978 + $0x208] sm:$0xff]
        %v2045 = vld [vmem:[%s1978 + $0x210] sm:$0xff]
        %v2046 = vld [vmem:[%s1978 + $0x218] sm:$0xff]
        %v2047 = vld [vmem:[%s1978 + $0x220] sm:$0xff]
        %v2048 = vld [vmem:[%s1978 + $0x228] sm:$0xff]
        %v2049 = vld [vmem:[%s1978 + $0x230] sm:$0xff]
        %v2050 = vld [vmem:[%s1978 + $0x238] sm:$0xff]
        %v2051 = vld [vmem:[%s1978 + $0x240] sm:$0xff]
        %v2052 = vld [vmem:[%s1978 + $0x248] sm:$0xff]
        %v2053 = vld [vmem:[%s1978 + $0x250] sm:$0xff]
        %v2054 = vld [vmem:[%s1978 + $0x258] sm:$0xff]
        %v2055 = vld [vmem:[%s1978 + $0x260] sm:$0xff]
        %v2056 = vld [vmem:[%s1978 + $0x268] sm:$0xff]
        %v2057 = vld [vmem:[%s1978 + $0x270] sm:$0xff]
        %v2058 = vld [vmem:[%s1978 + $0x278] sm:$0xff]
        %v2059 = vld [vmem:[%s1978 + $0x280] sm:$0xff]
        %v2060 = vld [vmem:[%s1978 + $0x288] sm:$0xff]
        %v2061 = vld [vmem:[%s1978 + $0x290] sm:$0xff]
        %v2062 = vld [vmem:[%s1978 + $0x298] sm:$0xff]
        %v2063 = vld [vmem:[%s1978 + $0x2a0] sm:$0xff]
        %v2064 = vld [vmem:[%s1978 + $0x2a8] sm:$0xff]
        %v2065 = vld [vmem:[%s1978 + $0x2b0] sm:$0xff]
        %v2066 = vld [vmem:[%s1978 + $0x2b8] sm:$0xff]
        %v2067 = vld [vmem:[%s1978 + $0x2c0] sm:$0xff]
        %v2068 = vld [vmem:[%s1978 + $0x2c8] sm:$0xff]
        %v2069 = vld [vmem:[%s1978 + $0x2d0] sm:$0xff]
        %v2070 = vld [vmem:[%s1978 + $0x2d8] sm:$0xff]
        %v2071 = vld [vmem:[%s1978 + $0x2e0] sm:$0xff]
        %v2072 = vld [vmem:[%s1978 + $0x2e8] sm:$0xff]
        %v2073 = vld [vmem:[%s1978 + $0x2f0] sm:$0xff]
        %v2074 = vld [vmem:[%s1978 + $0x2f8] sm:$0xff]
        %v2075 = vld [vmem:[%s1978 + $0x300] sm:$0xff]
        %v2076 = vld [vmem:[%s1978 + $0x308] sm:$0xff]
        %v2077 = vld [vmem:[%s1978 + $0x310] sm:$0xff]
        %v2078 = vld [vmem:[%s1978 + $0x318] sm:$0xff]
        %v2079 = vld [vmem:[%s1978 + $0x320] sm:$0xff]
        %v2080 = vld [vmem:[%s1978 + $0x328] sm:$0xff]
        %v2081 = vld [vmem:[%s1978 + $0x330] sm:$0xff]
        %v2082 = vld [vmem:[%s1978 + $0x338] sm:$0xff]
        %v2083 = vld [vmem:[%s1978 + $0x340] sm:$0xff]
        %v2084 = vld [vmem:[%s1978 + $0x348] sm:$0xff]
        %v2085 = vld [vmem:[%s1978 + $0x350] sm:$0xff]
        %v2086 = vld [vmem:[%s1978 + $0x358] sm:$0xff]
        %v2087 = vld [vmem:[%s1978 + $0x360] sm:$0xff]
        %v2088 = vld [vmem:[%s1978 + $0x368] sm:$0xff]
        %v2089 = vld [vmem:[%s1978 + $0x370] sm:$0xff]
        %v2090 = vld [vmem:[%s1978 + $0x378] sm:$0xff]
        %v2091 = vld [vmem:[%s1978 + $0x380] sm:$0xff]
        %v2092 = vld [vmem:[%s1978 + $0x388] sm:$0xff]
        %v2093 = vld [vmem:[%s1978 + $0x390] sm:$0xff]
        %v2094 = vld [vmem:[%s1978 + $0x398] sm:$0xff]
        %v2095 = vld [vmem:[%s1978 + $0x3a0] sm:$0xff]
        %v2096 = vld [vmem:[%s1978 + $0x3a8] sm:$0xff]
        %v2097 = vld [vmem:[%s1978 + $0x3b0] sm:$0xff]
        %v2098 = vld [vmem:[%s1978 + $0x3b8] sm:$0xff]
        %v2099 = vld [vmem:[%s1978 + $0x3c0] sm:$0xff]
        %v2100 = vld [vmem:[%s1978 + $0x3c8] sm:$0xff]
        %v2101 = vld [vmem:[%s1978 + $0x3d0] sm:$0xff]
        %v2102 = vld [vmem:[%s1978 + $0x3d8] sm:$0xff]
        %v2104 = vsel %vm1244, %v1437, 0
        %2106 = vmatprep.subr.mxu0 %v1980
        %2107 = vmatpush1.msra.mxu0 %v1979
        %2108 = vmatprep.subr.mxu0 %v1984
        %2109 = vmatpush1.msra.mxu0 %v1983
        %2110 = vmatprep.subr.mxu0 %v1988
        %2111 = vmatpush1.msra.mxu0 %v1987
        %2112 = vmatprep.subr.mxu0 %v1992
        %2113 = vmatpush1.msra.mxu0 %v1991
        %2114 = vmatprep.subr.mxu0 %v1996
        %2115 = vmatpush1.msra.mxu0 %v1995
        %2116 = vmatprep.subr.mxu0 %v2000
        %2117 = vmatpush1.msra.mxu0 %v1999
        %2118 = vmatprep.subr.mxu0 %v2004
        %2119 = vmatpush1.msra.mxu0 %v2003
        %2120 = vmatprep.subr.mxu0 %v2008
        %2121 = vmatpush1.msra.mxu0 %v2007
        %2122 = vmatprep.subr.mxu0 %v2012
        %2123 = vmatpush1.msra.mxu0 %v2011
        %2124 = vmatprep.subr.mxu0 %v2016
        %2125 = vmatpush1.msra.mxu0 %v2015
        %2126 = vmatprep.subr.mxu0 %v2020
        %2127 = vmatpush1.msra.mxu0 %v2019
        %2128 = vmatprep.subr.mxu0 %v2024
        %2129 = vmatpush1.msra.mxu0 %v2023
        %2130 = vmatprep.subr.mxu0 %v2028
        %2131 = vmatpush1.msra.mxu0 %v2027
        %2132 = vmatprep.subr.mxu0 %v2032
        %2133 = vmatpush1.msra.mxu0 %v2031
        %2134 = vmatprep.subr.mxu0 %v2036
        %2135 = vmatpush1.msra.mxu0 %v2035
        %2136 = vmatprep.subr.mxu0 %v2040
        %2137 = vmatpush1.msra.mxu0 %v2039
        %2138 = vmatprep.subr.mxu0 %v2044
        %2139 = vmatpush1.msra.mxu0 %v2043
        %2140 = vmatprep.subr.mxu0 %v2048
        %2141 = vmatpush1.msra.mxu0 %v2047
        %2142 = vmatprep.subr.mxu0 %v2052
        %2143 = vmatpush1.msra.mxu0 %v2051
        %2144 = vmatprep.subr.mxu0 %v2056
        %2145 = vmatpush1.msra.mxu0 %v2055
        %2146 = vmatprep.subr.mxu0 %v2060
        %2147 = vmatpush1.msra.mxu0 %v2059
        %2148 = vmatprep.subr.mxu0 %v2064
        %2149 = vmatpush1.msra.mxu0 %v2063
        %2150 = vmatprep.subr.mxu0 %v2068
        %2151 = vmatpush1.msra.mxu0 %v2067
        %2152 = vmatprep.subr.mxu0 %v2072
        %2153 = vmatpush1.msra.mxu0 %v2071
        %2154 = vmatprep.subr.mxu0 %v2076
        %2155 = vmatpush1.msra.mxu0 %v2075
        %2156 = vmatprep.subr.mxu0 %v2080
        %2157 = vmatpush1.msra.mxu0 %v2079
        %2158 = vmatprep.subr.mxu0 %v2084
        %2159 = vmatpush1.msra.mxu0 %v2083
        %2160 = vmatprep.subr.mxu0 %v2088
        %2161 = vmatpush1.msra.mxu0 %v2087
        %2162 = vmatprep.subr.mxu0 %v2092
        %2163 = vmatpush1.msra.mxu0 %v2091
        %2164 = vmatprep.subr.mxu0 %v2096
        %2165 = vmatpush1.msra.mxu0 %v2095
        %2166 = vmatprep.subr.mxu0 %v2100
        %2167 = vmatpush1.msra.mxu0 %v2099
        %2168 = vmatprep.subr.mxu0 0.0
        %2169 = vmatpush1.msra.mxu0 0.0
        %2170 = vmatprep.mubr.f32.mxu0 %v2104
        %2171 = vmatmul.mubr.f32.gmra.mrb[0].mxu0 %v1435
        %v2172 = vpop.f32.mrb[0].mxu0
        %v2173 = vadd.f32 0.0, %v2172
        %v2174 = vpop.f32.mrb[0].mxu0
        %v2175 = vadd.f32 0.0, %v2174
        %2176 = vdwg.mxu0
        %2177 = vmatprep.subr.mxu0 %v1982
        %2178 = vmatpush1.msra.mxu0 %v1981
        %2179 = vmatprep.subr.mxu0 %v1986
        %2180 = vmatpush1.msra.mxu0 %v1985
        %2181 = vmatprep.subr.mxu0 %v1990
        %2182 = vmatpush1.msra.mxu0 %v1989
        %2183 = vmatprep.subr.mxu0 %v1994
        %2184 = vmatpush1.msra.mxu0 %v1993
        %2185 = vmatprep.subr.mxu0 %v1998
        %2186 = vmatpush1.msra.mxu0 %v1997
        %2187 = vmatprep.subr.mxu0 %v2002
        %2188 = vmatpush1.msra.mxu0 %v2001
        %2189 = vmatprep.subr.mxu0 %v2006
        %2190 = vmatpush1.msra.mxu0 %v2005
        %2191 = vmatprep.subr.mxu0 %v2010
        %2192 = vmatpush1.msra.mxu0 %v2009
        %2193 = vmatprep.subr.mxu0 %v2014
        %2194 = vmatpush1.msra.mxu0 %v2013
        %2195 = vmatprep.subr.mxu0 %v2018
        %2196 = vmatpush1.msra.mxu0 %v2017
        %2197 = vmatprep.subr.mxu0 %v2022
        %2198 = vmatpush1.msra.mxu0 %v2021
        %2199 = vmatprep.subr.mxu0 %v2026
        %2200 = vmatpush1.msra.mxu0 %v2025
        %2201 = vmatprep.subr.mxu0 %v2030
        %2202 = vmatpush1.msra.mxu0 %v2029
        %2203 = vmatprep.subr.mxu0 %v2034
        %2204 = vmatpush1.msra.mxu0 %v2033
        %2205 = vmatprep.subr.mxu0 %v2038
        %2206 = vmatpush1.msra.mxu0 %v2037
        %2207 = vmatprep.subr.mxu0 %v2042
        %2208 = vmatpush1.msra.mxu0 %v2041
        %2209 = vmatprep.subr.mxu0 %v2046
        %2210 = vmatpush1.msra.mxu0 %v2045
        %2211 = vmatprep.subr.mxu0 %v2050
        %2212 = vmatpush1.msra.mxu0 %v2049
        %2213 = vmatprep.subr.mxu0 %v2054
        %2214 = vmatpush1.msra.mxu0 %v2053
        %2215 = vmatprep.subr.mxu0 %v2058
        %2216 = vmatpush1.msra.mxu0 %v2057
        %2217 = vmatprep.subr.mxu0 %v2062
        %2218 = vmatpush1.msra.mxu0 %v2061
        %2219 = vmatprep.subr.mxu0 %v2066
        %2220 = vmatpush1.msra.mxu0 %v2065
        %2221 = vmatprep.subr.mxu0 %v2070
        %2222 = vmatpush1.msra.mxu0 %v2069
        %2223 = vmatprep.subr.mxu0 %v2074
        %2224 = vmatpush1.msra.mxu0 %v2073
        %2225 = vmatprep.subr.mxu0 %v2078
        %2226 = vmatpush1.msra.mxu0 %v2077
        %2227 = vmatprep.subr.mxu0 %v2082
        %2228 = vmatpush1.msra.mxu0 %v2081
        %2229 = vmatprep.subr.mxu0 %v2086
        %2230 = vmatpush1.msra.mxu0 %v2085
        %2231 = vmatprep.subr.mxu0 %v2090
        %2232 = vmatpush1.msra.mxu0 %v2089
        %2233 = vmatprep.subr.mxu0 %v2094
        %2234 = vmatpush1.msra.mxu0 %v2093
        %2235 = vmatprep.subr.mxu0 %v2098
        %2236 = vmatpush1.msra.mxu0 %v2097
        %2237 = vmatprep.subr.mxu0 %v2102
        %2238 = vmatpush1.msra.mxu0 %v2101
        %2239 = vmatprep.subr.mxu0 0.0
        %2240 = vmatpush1.msra.mxu0 0.0
        %2241 = vmatprep.mubr.f32.mxu0 %v2104
        %2242 = vmatmul.mubr.f32.gmra.mrb[0].mxu0 %v1435
        %v2243 = vpop.f32.mrb[0].mxu0
        %v2244 = vadd.f32 0.0, %v2243
        %v2245 = vpop.f32.mrb[0].mxu0
        %v2246 = vadd.f32 0.0, %v2245
        %2247 = vdwg.mxu0
        %v2248 = vadd.f32 %v1903, %v2173
        %v2249 = vadd.f32 %v1905, %v2175
        %v2250 = vadd.f32 %v1974, %v2244
        %v2251 = vadd.f32 %v1976, %v2246
        %v2252 = vld [vmem:[#allocation13] sm:$0xff]
        %2254 = vset.pattern.permute.xlu0 0
        %2255 = vperm.xlu0 %2254, %v2252
        %v2256 = vpop.permute.xlu0 %2255
        %v2258 = vadd.f32 %v2248, %v2256
        %v2259 = vadd.f32 %v2249, %v2256
        %v2260 = vadd.f32 %v2250, %v2256
        %v2261 = vadd.f32 %v2251, %v2256
        %v2266 = vcombine.low %v2258, %v2259
        %v2267 = vcombine.low %v2260, %v2261
        %v2269 = vunpack.c.l.s4 1983009808
        %v2270 = vunpack.c.0.s8 %v2269
        %v2271 = vlaneseq
        %v2272 = vshrl.u32 %v2271, 7
        %v2273 = vsub.s32 %v2270, %v2272
        %v2274 = vrot.slane %v2266, %v2273
        %v2276 = vunpack.c.l.s4 1983009808
        %v2277 = vunpack.c.0.s8 %v2276
        %v2278 = vlaneseq
        %v2279 = vshrl.u32 %v2278, 7
        %v2280 = vsub.s32 %v2277, %v2279
        %v2281 = vrot.slane %v2267, %v2280
        %v2282 = vcombine.low %v2274, %v2281
        %vm2284 = vcmask 1041408
        %vm2285 = vcmask 1043458
        %vm2286 = vmor %vm2285, %vm2284
        %vm2287 = vcmask 1045508
        %vm2288 = vmor %vm2287, %vm2286
        %vm2289 = vcmask 850950
        %vm2290 = vmor %vm2289, %vm2288
        %2291 = vst.msk [vmem:[%s702] sm:$0xff] %vm2290, %v2282
        %p2292 = scmp.lt.s32.totalorder %s32, 1
        %s2293 = scalar_select %p2292, %s32, 1
        %s2294 = smul.addr %s2293, 4
        %s2295 = smul.addr %s2294, 2
        %s2296 = scalar_lea.vmem %s13, %s2295
        %p2297 = scmp.lt.s32.totalorder %s32, 1
        %s2298 = scalar_select %p2297, %s32, 1
        %s2299 = smul.addr %s2298, 4
        %s2300 = smul.addr %s2299, 8
        %s2301 = scalar_lea.vmem %s14, %s2300
        %p2302 = scmp.lt.s32.totalorder %s32, 1
        %s2303 = scalar_select %p2302, %s32, 1
        %s2304 = smul.addr %s2303, 4
        %s2305 = smul.addr %s2304, 8
        %s2306 = scalar_lea.vmem %s15, %s2305
        // Predicated region
        $region105: #{forward.1} parent=71 // pred_check
          %p2307 = pneg %p348
        $region106: #{forward.1} parent=71 // pred_check_branch
          %2309 = sbr.rel (%p2307) target = $region108
        $region107: #{forward.1} parent=71 // pred_region
          _
        $region108: #{forward.1} parent=71 // pred_fallthru
          _
        // Predicated region
        $region109: #{forward.1} parent=71 // pred_check
          %p2310 = pneg %p374
        $region110: #{forward.1} parent=71 // pred_check_branch
          %2312 = sbr.rel (%p2310) target = $region112
        $region111: #{forward.1} parent=71 // pred_region
          _
        $region112: #{forward.1} parent=71 // pred_fallthru
          _
        // Predicated region
        $region113: #{forward.1} parent=71 // pred_check
          %p2313 = pneg %p400
        $region114: #{forward.1} parent=71 // pred_check_branch
          %2315 = sbr.rel (%p2313) target = $region116
        $region115: #{forward.1} parent=71 // pred_region
          _
        $region116: #{forward.1} parent=71 // pred_fallthru
          _
      $region72: #{forward.1} parent=5 // pred_fallthru
        _
      %p2316 = scmp.le.s32.totalorder 2, %s27
      // Predicated region
      $region117: #{forward.1} parent=5 // pred_check
        %p2317 = pneg %p2316
      $region118: #{forward.1} parent=5 // pred_check_branch
        %2319 = sbr.rel (%p2317) target = $region120
      $region119: #{forward.1} parent=5 // pred_region
        %s2320 = ssub.s32 %s27, 2
        // Predicated region
        $region121: #{forward.1} parent=119 // pred_check
          %p2321 = pneg %p354
        $region122: #{forward.1} parent=119 // pred_check_branch
          %2323 = sbr.rel (%p2321) target = $region124
        $region123: #{forward.1} parent=119 // pred_region
          %p2324 = scmp.lt.s32.totalorder %s33, 1
          %s2325 = scalar_select %p2324, %s33, 1
          %s2326 = smul.addr %s2325, 4
          %s2327 = smul.addr %s2326, 2
          %s2328 = scalar_lea.vmem %s13, %s2327
        $region124: #{forward.1} parent=119 // pred_fallthru
          _
        // Predicated region
        $region125: #{forward.1} parent=119 // pred_check
          %p2329 = pneg %p380
        $region126: #{forward.1} parent=119 // pred_check_branch
          %2331 = sbr.rel (%p2329) target = $region128
        $region127: #{forward.1} parent=119 // pred_region
          %p2332 = scmp.lt.s32.totalorder %s33, 1
          %s2333 = scalar_select %p2332, %s33, 1
          %s2334 = smul.addr %s2333, 4
          %s2335 = smul.addr %s2334, 8
          %s2336 = scalar_lea.vmem %s14, %s2335
        $region128: #{forward.1} parent=119 // pred_fallthru
          _
        // Predicated region
        $region129: #{forward.1} parent=119 // pred_check
          %p2337 = pneg %p406
        $region130: #{forward.1} parent=119 // pred_check_branch
          %2339 = sbr.rel (%p2337) target = $region132
        $region131: #{forward.1} parent=119 // pred_region
          %p2340 = scmp.lt.s32.totalorder %s33, 1
          %s2341 = scalar_select %p2340, %s33, 1
          %s2342 = smul.addr %s2341, 4
          %s2343 = smul.addr %s2342, 8
          %s2344 = scalar_lea.vmem %s15, %s2343
        $region132: #{forward.1} parent=119 // pred_fallthru
          _
      $region120: #{forward.1} parent=5 // pred_fallthru
        _
    $region6: #{forward.1} parent=1 // loop_footer
      %s31 = sadd.s32 1, %s27
    $region7: #{forward.1} parent=1 // loop_footer_branch
      %26 = sbr.rel target = $region3
    $region8: #{forward.1} parent=1 // loop_exit
      _
    %2345 = vsyncpa [#allocation3], 1
    %s2346 = scalar_lea.sflag [#allocation3], 1
    %2347 = vsyncpa %s2346, 1
    %2348 = vsyncpa [#allocation5], 1
    %2349 = vsyncpa [#allocation8], 1
    %2350 = vsyncpa [#allocation11], 1
    %2351 = vsyncpa [#allocation14], 1

</llo_original>
